<compile_context>
chip_gen: v5e
topology: v5e:2x2
jax: 0.10.0
libtpu: 0.0.40
codegen_flags: <defaults>
</compile_context>

<pallas_src>
import math

import jax
import jax.numpy as jnp
import numpy as np
from jax.experimental import pallas as pl
from jax.experimental.pallas import tpu as pltpu


# ----------------------------------------------------------------------------
# Fused Pallas kernel: one grid step == full LeNet-5 forward for one image.
# Activation layout inside the kernel: 2-D (H, W*C), column index = w*C + c.
# ----------------------------------------------------------------------------
def _lenet5_fused_kernel(x_ref,
                         w1_ref, b1_ref, p1h_ref, p1w_ref,
                         w2_ref, b2_ref, p2h_ref, p2w_ref,
                         w3_ref, b3_ref,
                         fc1w_ref, fc1b_ref, fc2w_ref, fc2b_ref,
                         out_ref):
    f32 = jnp.float32

    def conv_tanh(a, w_ref, b_ref):
        # a: (H, W*Cin); w_ref: (k, W*Cin, Wo*Cout) banded; b_ref: (1, Wo*Cout)
        k = w_ref.shape[0]
        ho = a.shape[0] - k + 1
        acc = jnp.dot(a[0:ho, :], w_ref[0], preferred_element_type=f32)
        for kh in range(1, k):
            acc = acc + jnp.dot(a[kh:kh + ho, :], w_ref[kh],
                                preferred_element_type=f32)
        return jnp.tanh(acc + b_ref[...])

    def avg_pool_2x2(a, ph_ref, pw_ref):
        # a: (H, W*C) -> (H//2, (W//2)*C) via two 0.5-weighted contractions.
        t = jnp.dot(ph_ref[...], a, preferred_element_type=f32)
        return jnp.dot(t, pw_ref[...], preferred_element_type=f32)

    a = x_ref[0].astype(f32)                   # (32, 96)   padded input image
    a = conv_tanh(a, w1_ref, b1_ref)           # (28, 168)  conv1 + tanh
    a = avg_pool_2x2(a, p1h_ref, p1w_ref)      # (14, 84)   pool1
    a = conv_tanh(a, w2_ref, b2_ref)           # (10, 160)  conv2 + tanh
    a = avg_pool_2x2(a, p2h_ref, p2w_ref)      # (5, 80)    pool2
    a = conv_tanh(a, w3_ref, b3_ref)           # (1, 120)   conv3 + tanh == flatten
    a = jnp.tanh(jnp.dot(a, fc1w_ref[...], preferred_element_type=f32)
                 + fc1b_ref[...])              # (1, 84)    fc1 + tanh
    logits = (jnp.dot(a, fc2w_ref[...], preferred_element_type=f32)
              + fc2b_ref[...])                 # (1, n_classes)
    out_ref[0] = logits.astype(out_ref.dtype)


# ----------------------------------------------------------------------------
# One-time host-side weight preprocessing (tiny tensors).
# ----------------------------------------------------------------------------
def _conv_band_weights(w, w_in):
    """PyTorch conv weight (O, C, k, k) -> (k, w_in*C, Wo*O) banded matrices.

    M[kh][w*C + c, wo*O + o] = w[o, c, kh, w - wo] for 0 <= w - wo < k, else 0,
    so that  out[ho, wo*O+o] = sum_kh (A[kh:kh+Ho, :] @ M[kh])[ho, wo*O+o].
    """
    o, c, k, _ = w.shape
    wo = w_in - k + 1
    sel = np.zeros((w_in, wo, k), np.float32)
    for v in range(wo):
        for t in range(k):
            sel[v + t, v, t] = 1.0
    m = jnp.einsum("wvt,ocht->hwcvo", jnp.asarray(sel), w.astype(jnp.float32))
    return m.reshape(k, w_in * c, wo * o)


def _pool_matrices(h, w, c):
    """Constant matrices for 2x2 avg-pool on an (h, w*c) activation."""
    ph = np.zeros((h // 2, h), np.float32)
    ph[np.arange(h // 2), 2 * np.arange(h // 2)] = 0.5
    ph[np.arange(h // 2), 2 * np.arange(h // 2) + 1] = 0.5
    pw = np.zeros((w * c, (w // 2) * c), np.float32)
    for q in range(w // 2):
        for d in range(2):
            pw[(2 * q + d) * c + np.arange(c), q * c + np.arange(c)] = 0.5
    return jnp.asarray(ph), jnp.asarray(pw)


def prepare_params(params):
    """Convert PyTorch-layout parameters into kernel-ready tensors (done once)."""
    f32 = jnp.float32
    p1h, p1w = _pool_matrices(28, 28, 6)
    p2h, p2w = _pool_matrices(10, 10, 16)
    return {
        "w1": _conv_band_weights(params["conv1_w"], 32),        # (5, 96, 168)
        "b1": jnp.tile(params["conv1_b"].astype(f32), 28)[None, :],
        "p1h": p1h, "p1w": p1w,                                 # (14,28),(168,84)
        "w2": _conv_band_weights(params["conv2_w"], 14),        # (5, 84, 160)
        "b2": jnp.tile(params["conv2_b"].astype(f32), 10)[None, :],
        "p2h": p2h, "p2w": p2w,                                 # (5,10),(160,80)
        "w3": _conv_band_weights(params["conv3_w"], 5),         # (5, 80, 120)
        "b3": params["conv3_b"].astype(f32)[None, :],
        "fc1w": params["fc1_w"].astype(f32).T,                  # (120, 84)
        "fc1b": params["fc1_b"].astype(f32)[None, :],
        "fc2w": params["fc2_w"].astype(f32).T,                  # (84, n_classes)
        "fc2b": params["fc2_b"].astype(f32)[None, :],
    }


_WEIGHT_NAMES = ["w1", "b1", "p1h", "p1w", "w2", "b2", "p2h", "p2w",
                 "w3", "b3", "fc1w", "fc1b", "fc2w", "fc2b"]


@jax.jit
def lenet5_forward(kparams, x):
    """x: (N, 3, 28, 28) NCHW float -> logits (N, n_classes)."""
    n = x.shape[0]
    n_classes = kparams["fc2w"].shape[1]

    # Only host-side glue: pad(2) + NCHW->channel-minor (H, W*C) planes.
    xp = jnp.pad(x.astype(jnp.float32), ((0, 0), (0, 0), (2, 2), (2, 2)))
    xp = xp.transpose(0, 2, 3, 1).reshape(n, 32, 32 * 3)        # (N, 32, 96)

    weights = [kparams[name] for name in _WEIGHT_NAMES]

    def const_spec(arr):
        return pl.BlockSpec(arr.shape, lambda i, r=arr.ndim: (0,) * r)

    out = pl.pallas_call(
        _lenet5_fused_kernel,
        out_shape=jax.ShapeDtypeStruct((n, 1, n_classes), jnp.float32),
        grid=(n,),
        in_specs=[pl.BlockSpec((1, 32, 96), lambda i: (i, 0, 0))]
                 + [const_spec(w) for w in weights],
        out_specs=pl.BlockSpec((1, 1, n_classes), lambda i: (i, 0, 0)),
        compiler_params=pltpu.CompilerParams(
            dimension_semantics=("parallel",)),
    )(xp, *weights)
    return out.reshape(n, n_classes)


# ----------------------------------------------------------------------------
# Parameters + pure-JAX reference (for correctness checking only)
# ----------------------------------------------------------------------------
def init_params(key, n_classes):
    ks = jax.random.split(key, 10)

    def u(k, shape, fan_in):
        bound = 1.0 / math.sqrt(fan_in)
        return jax.random.uniform(k, shape, jnp.float32, -bound, bound)

    return {
        "conv1_w": u(ks[0], (6, 3, 5, 5), 3 * 25),
        "conv1_b": u(ks[1], (6,), 3 * 25),
        "conv2_w": u(ks[2], (16, 6, 5, 5), 6 * 25),
        "conv2_b": u(ks[3], (16,), 6 * 25),
        "conv3_w": u(ks[4], (120, 16, 5, 5), 16 * 25),
        "conv3_b": u(ks[5], (120,), 16 * 25),
        "fc1_w": u(ks[6], (84, 120), 120),
        "fc1_b": u(ks[7], (84,), 120),
        "fc2_w": u(ks[8], (n_classes, 84), 84),
        "fc2_b": u(ks[9], (n_classes,), 84),
    }


def ref_forward(params, x):
    hp = jax.lax.Precision.HIGHEST

    def conv(x, w, b, pad):
        y = jax.lax.conv_general_dilated(
            x, w, (1, 1), [(pad, pad), (pad, pad)],
            dimension_numbers=("NCHW", "OIHW", "NCHW"), precision=hp)
        return jnp.tanh(y + b[None, :, None, None])

    def pool(x):
        nb, c, h, w = x.shape
        return x.reshape(nb, c, h // 2, 2, w // 2, 2).mean(axis=(3, 5))

    x = pool(conv(x, params["conv1_w"], params["conv1_b"], 2))
    x = pool(conv(x, params["conv2_w"], params["conv2_b"], 0))
    x = conv(x, params["conv3_w"], params["conv3_b"], 0)
    x = x.reshape(x.shape[0], -1)
    x = jnp.tanh(jnp.dot(x, params["fc1_w"].T, precision=hp) + params["fc1_b"])
    return jnp.dot(x, params["fc2_w"].T, precision=hp) + params["fc2_b"]


if __name__ == "__main__":
    n_classes = 10
    key = jax.random.PRNGKey(0)
    kp, kx = jax.random.split(key)
    params = init_params(kp, n_classes)
    kparams = prepare_params(params)        # one-time weight preprocessing

    # Classic LeNet-5 geometry: 3x28x28 input (+pad 2) so conv3 output is
    # 120x1x1 before Flatten, as required by Linear(in_features=120).
    x = jax.random.normal(kx, (2, 3, 28, 28), jnp.float32)

    logits = jax.block_until_ready(lenet5_forward(kparams, x))
    assert logits.shape == (2, n_classes)

    ref = jax.block_until_ready(ref_forward(params, x))
    np.testing.assert_allclose(np.asarray(logits), np.asarray(ref),
                               rtol=2e-3, atol=2e-3)
    print("KERNEL_OK")
</pallas_src>

<mosaic_0001>
module attributes {stable_mosaic.version = 11 : i64} {
  func.func @_lenet5_fused_kernel(%arg0: i32, %arg1: memref<1x32x96xf32, #tpu.memory_space<vmem>>, %arg2: memref<5x96x168xf32, #tpu.memory_space<vmem>>, %arg3: memref<1x168xf32, #tpu.memory_space<vmem>>, %arg4: memref<14x28xf32, #tpu.memory_space<vmem>>, %arg5: memref<168x84xf32, #tpu.memory_space<vmem>>, %arg6: memref<5x84x160xf32, #tpu.memory_space<vmem>>, %arg7: memref<1x160xf32, #tpu.memory_space<vmem>>, %arg8: memref<5x10xf32, #tpu.memory_space<vmem>>, %arg9: memref<160x80xf32, #tpu.memory_space<vmem>>, %arg10: memref<5x80x120xf32, #tpu.memory_space<vmem>>, %arg11: memref<1x120xf32, #tpu.memory_space<vmem>>, %arg12: memref<120x84xf32, #tpu.memory_space<vmem>>, %arg13: memref<1x84xf32, #tpu.memory_space<vmem>>, %arg14: memref<84x10xf32, #tpu.memory_space<vmem>>, %arg15: memref<1x10xf32, #tpu.memory_space<vmem>>, %arg16: memref<1x1x10xf32, #tpu.memory_space<vmem>>) attributes {dimension_semantics = [#tpu.dimension_semantics<parallel>], iteration_bounds = array<i64: 2>, scalar_prefetch = 0 : i64, scratch_operands = 0 : i64, tpu.core_type = #tpu.core_type<tc>, window_params = [{transform_indices = @transform_0, window_bounds = array<i64: 1, 32, 96>}, {pipeline_mode = #tpu.pipeline_mode<synchronous>, transform_indices = @transform_1, window_bounds = array<i64: 5, 96, 168>}, {pipeline_mode = #tpu.pipeline_mode<synchronous>, transform_indices = @transform_2, window_bounds = array<i64: 1, 168>}, {pipeline_mode = #tpu.pipeline_mode<synchronous>, transform_indices = @transform_3, window_bounds = array<i64: 14, 28>}, {pipeline_mode = #tpu.pipeline_mode<synchronous>, transform_indices = @transform_4, window_bounds = array<i64: 168, 84>}, {pipeline_mode = #tpu.pipeline_mode<synchronous>, transform_indices = @transform_5, window_bounds = array<i64: 5, 84, 160>}, {pipeline_mode = #tpu.pipeline_mode<synchronous>, transform_indices = @transform_6, window_bounds = array<i64: 1, 160>}, {pipeline_mode = #tpu.pipeline_mode<synchronous>, transform_indices = @transform_7, window_bounds = array<i64: 5, 10>}, {pipeline_mode = #tpu.pipeline_mode<synchronous>, transform_indices = @transform_8, window_bounds = array<i64: 160, 80>}, {pipeline_mode = #tpu.pipeline_mode<synchronous>, transform_indices = @transform_9, window_bounds = array<i64: 5, 80, 120>}, {pipeline_mode = #tpu.pipeline_mode<synchronous>, transform_indices = @transform_10, window_bounds = array<i64: 1, 120>}, {pipeline_mode = #tpu.pipeline_mode<synchronous>, transform_indices = @transform_11, window_bounds = array<i64: 120, 84>}, {pipeline_mode = #tpu.pipeline_mode<synchronous>, transform_indices = @transform_12, window_bounds = array<i64: 1, 84>}, {pipeline_mode = #tpu.pipeline_mode<synchronous>, transform_indices = @transform_13, window_bounds = array<i64: 84, 10>}, {pipeline_mode = #tpu.pipeline_mode<synchronous>, transform_indices = @transform_14, window_bounds = array<i64: 1, 10>}, {transform_indices = @transform_15, window_bounds = array<i64: 1, 1, 10>}]} {
    %c0 = arith.constant 0 : index
    %c0_0 = arith.constant 0 : index
    %c0_1 = arith.constant 0 : index
    %0 = vector.load %arg1[%c0, %c0_0, %c0_1] : memref<1x32x96xf32, #tpu.memory_space<vmem>>, vector<1x32x96xf32>
    %1 = vector.shape_cast %0 : vector<1x32x96xf32> to vector<32x96xf32>
    %2 = vector.extract_strided_slice %1 {offsets = [0, 0], sizes = [28, 96], strides = [1, 1]} : vector<32x96xf32> to vector<28x96xf32>
    %c0_2 = arith.constant 0 : index
    %c0_3 = arith.constant 0 : index
    %c0_4 = arith.constant 0 : index
    %3 = vector.load %arg2[%c0_2, %c0_3, %c0_4] : memref<5x96x168xf32, #tpu.memory_space<vmem>>, vector<1x96x168xf32>
    %4 = vector.shape_cast %3 : vector<1x96x168xf32> to vector<96x168xf32>
    %cst = arith.constant dense<0.000000e+00> : vector<28x168xf32>
    %5 = tpu.matmul %2, %4, %cst {dimension_numbers = #tpu.dot_dimension_numbers<[1], [0], [0], [1], [0, 0, 1, 1], [], []>} : vector<28x96xf32>, vector<96x168xf32>, vector<28x168xf32> -> vector<28x168xf32>
    %6 = vector.extract_strided_slice %1 {offsets = [1, 0], sizes = [28, 96], strides = [1, 1]} : vector<32x96xf32> to vector<28x96xf32>
    %c1 = arith.constant 1 : index
    %c0_5 = arith.constant 0 : index
    %c0_6 = arith.constant 0 : index
    %7 = vector.load %arg2[%c1, %c0_5, %c0_6] : memref<5x96x168xf32, #tpu.memory_space<vmem>>, vector<1x96x168xf32>
    %8 = vector.shape_cast %7 : vector<1x96x168xf32> to vector<96x168xf32>
    %cst_7 = arith.constant dense<0.000000e+00> : vector<28x168xf32>
    %9 = tpu.matmul %6, %8, %cst_7 {dimension_numbers = #tpu.dot_dimension_numbers<[1], [0], [0], [1], [0, 0, 1, 1], [], []>} : vector<28x96xf32>, vector<96x168xf32>, vector<28x168xf32> -> vector<28x168xf32>
    %10 = arith.addf %5, %9 : vector<28x168xf32>
    %11 = vector.extract_strided_slice %1 {offsets = [2, 0], sizes = [28, 96], strides = [1, 1]} : vector<32x96xf32> to vector<28x96xf32>
    %c2 = arith.constant 2 : index
    %c0_8 = arith.constant 0 : index
    %c0_9 = arith.constant 0 : index
    %12 = vector.load %arg2[%c2, %c0_8, %c0_9] : memref<5x96x168xf32, #tpu.memory_space<vmem>>, vector<1x96x168xf32>
    %13 = vector.shape_cast %12 : vector<1x96x168xf32> to vector<96x168xf32>
    %cst_10 = arith.constant dense<0.000000e+00> : vector<28x168xf32>
    %14 = tpu.matmul %11, %13, %cst_10 {dimension_numbers = #tpu.dot_dimension_numbers<[1], [0], [0], [1], [0, 0, 1, 1], [], []>} : vector<28x96xf32>, vector<96x168xf32>, vector<28x168xf32> -> vector<28x168xf32>
    %15 = arith.addf %10, %14 : vector<28x168xf32>
    %16 = vector.extract_strided_slice %1 {offsets = [3, 0], sizes = [28, 96], strides = [1, 1]} : vector<32x96xf32> to vector<28x96xf32>
    %c3 = arith.constant 3 : index
    %c0_11 = arith.constant 0 : index
    %c0_12 = arith.constant 0 : index
    %17 = vector.load %arg2[%c3, %c0_11, %c0_12] : memref<5x96x168xf32, #tpu.memory_space<vmem>>, vector<1x96x168xf32>
    %18 = vector.shape_cast %17 : vector<1x96x168xf32> to vector<96x168xf32>
    %cst_13 = arith.constant dense<0.000000e+00> : vector<28x168xf32>
    %19 = tpu.matmul %16, %18, %cst_13 {dimension_numbers = #tpu.dot_dimension_numbers<[1], [0], [0], [1], [0, 0, 1, 1], [], []>} : vector<28x96xf32>, vector<96x168xf32>, vector<28x168xf32> -> vector<28x168xf32>
    %20 = arith.addf %15, %19 : vector<28x168xf32>
    %21 = vector.extract_strided_slice %1 {offsets = [4, 0], sizes = [28, 96], strides = [1, 1]} : vector<32x96xf32> to vector<28x96xf32>
    %c4 = arith.constant 4 : index
    %c0_14 = arith.constant 0 : index
    %c0_15 = arith.constant 0 : index
    %22 = vector.load %arg2[%c4, %c0_14, %c0_15] : memref<5x96x168xf32, #tpu.memory_space<vmem>>, vector<1x96x168xf32>
    %23 = vector.shape_cast %22 : vector<1x96x168xf32> to vector<96x168xf32>
    %cst_16 = arith.constant dense<0.000000e+00> : vector<28x168xf32>
    %24 = tpu.matmul %21, %23, %cst_16 {dimension_numbers = #tpu.dot_dimension_numbers<[1], [0], [0], [1], [0, 0, 1, 1], [], []>} : vector<28x96xf32>, vector<96x168xf32>, vector<28x168xf32> -> vector<28x168xf32>
    %25 = arith.addf %20, %24 : vector<28x168xf32>
    %c0_17 = arith.constant 0 : index
    %c0_18 = arith.constant 0 : index
    %26 = vector.load %arg3[%c0_17, %c0_18] : memref<1x168xf32, #tpu.memory_space<vmem>>, vector<1x168xf32>
    %27 = vector.broadcast %26 : vector<1x168xf32> to vector<28x168xf32>
    %28 = arith.addf %25, %27 : vector<28x168xf32>
    %29 = math.tanh %28 : vector<28x168xf32>
    %c0_19 = arith.constant 0 : index
    %c0_20 = arith.constant 0 : index
    %30 = vector.load %arg4[%c0_19, %c0_20] : memref<14x28xf32, #tpu.memory_space<vmem>>, vector<14x28xf32>
    %cst_21 = arith.constant dense<0.000000e+00> : vector<14x168xf32>
    %31 = tpu.matmul %30, %29, %cst_21 {dimension_numbers = #tpu.dot_dimension_numbers<[1], [0], [0], [1], [0, 0, 1, 1], [], []>} : vector<14x28xf32>, vector<28x168xf32>, vector<14x168xf32> -> vector<14x168xf32>
    %c0_22 = arith.constant 0 : index
    %c0_23 = arith.constant 0 : index
    %32 = vector.load %arg5[%c0_22, %c0_23] : memref<168x84xf32, #tpu.memory_space<vmem>>, vector<168x84xf32>
    %cst_24 = arith.constant dense<0.000000e+00> : vector<14x84xf32>
    %33 = tpu.matmul %31, %32, %cst_24 {dimension_numbers = #tpu.dot_dimension_numbers<[1], [0], [0], [1], [0, 0, 1, 1], [], []>} : vector<14x168xf32>, vector<168x84xf32>, vector<14x84xf32> -> vector<14x84xf32>
    %34 = vector.extract_strided_slice %33 {offsets = [0, 0], sizes = [10, 84], strides = [1, 1]} : vector<14x84xf32> to vector<10x84xf32>
    %c0_25 = arith.constant 0 : index
    %c0_26 = arith.constant 0 : index
    %c0_27 = arith.constant 0 : index
    %35 = vector.load %arg6[%c0_25, %c0_26, %c0_27] : memref<5x84x160xf32, #tpu.memory_space<vmem>>, vector<1x84x160xf32>
    %36 = vector.shape_cast %35 : vector<1x84x160xf32> to vector<84x160xf32>
    %cst_28 = arith.constant dense<0.000000e+00> : vector<10x160xf32>
    %37 = tpu.matmul %34, %36, %cst_28 {dimension_numbers = #tpu.dot_dimension_numbers<[1], [0], [0], [1], [0, 0, 1, 1], [], []>} : vector<10x84xf32>, vector<84x160xf32>, vector<10x160xf32> -> vector<10x160xf32>
    %38 = vector.extract_strided_slice %33 {offsets = [1, 0], sizes = [10, 84], strides = [1, 1]} : vector<14x84xf32> to vector<10x84xf32>
    %c1_29 = arith.constant 1 : index
    %c0_30 = arith.constant 0 : index
    %c0_31 = arith.constant 0 : index
    %39 = vector.load %arg6[%c1_29, %c0_30, %c0_31] : memref<5x84x160xf32, #tpu.memory_space<vmem>>, vector<1x84x160xf32>
    %40 = vector.shape_cast %39 : vector<1x84x160xf32> to vector<84x160xf32>
    %cst_32 = arith.constant dense<0.000000e+00> : vector<10x160xf32>
    %41 = tpu.matmul %38, %40, %cst_32 {dimension_numbers = #tpu.dot_dimension_numbers<[1], [0], [0], [1], [0, 0, 1, 1], [], []>} : vector<10x84xf32>, vector<84x160xf32>, vector<10x160xf32> -> vector<10x160xf32>
    %42 = arith.addf %37, %41 : vector<10x160xf32>
    %43 = vector.extract_strided_slice %33 {offsets = [2, 0], sizes = [10, 84], strides = [1, 1]} : vector<14x84xf32> to vector<10x84xf32>
    %c2_33 = arith.constant 2 : index
    %c0_34 = arith.constant 0 : index
    %c0_35 = arith.constant 0 : index
    %44 = vector.load %arg6[%c2_33, %c0_34, %c0_35] : memref<5x84x160xf32, #tpu.memory_space<vmem>>, vector<1x84x160xf32>
    %45 = vector.shape_cast %44 : vector<1x84x160xf32> to vector<84x160xf32>
    %cst_36 = arith.constant dense<0.000000e+00> : vector<10x160xf32>
    %46 = tpu.matmul %43, %45, %cst_36 {dimension_numbers = #tpu.dot_dimension_numbers<[1], [0], [0], [1], [0, 0, 1, 1], [], []>} : vector<10x84xf32>, vector<84x160xf32>, vector<10x160xf32> -> vector<10x160xf32>
    %47 = arith.addf %42, %46 : vector<10x160xf32>
    %48 = vector.extract_strided_slice %33 {offsets = [3, 0], sizes = [10, 84], strides = [1, 1]} : vector<14x84xf32> to vector<10x84xf32>
    %c3_37 = arith.constant 3 : index
    %c0_38 = arith.constant 0 : index
    %c0_39 = arith.constant 0 : index
    %49 = vector.load %arg6[%c3_37, %c0_38, %c0_39] : memref<5x84x160xf32, #tpu.memory_space<vmem>>, vector<1x84x160xf32>
    %50 = vector.shape_cast %49 : vector<1x84x160xf32> to vector<84x160xf32>
    %cst_40 = arith.constant dense<0.000000e+00> : vector<10x160xf32>
    %51 = tpu.matmul %48, %50, %cst_40 {dimension_numbers = #tpu.dot_dimension_numbers<[1], [0], [0], [1], [0, 0, 1, 1], [], []>} : vector<10x84xf32>, vector<84x160xf32>, vector<10x160xf32> -> vector<10x160xf32>
    %52 = arith.addf %47, %51 : vector<10x160xf32>
    %53 = vector.extract_strided_slice %33 {offsets = [4, 0], sizes = [10, 84], strides = [1, 1]} : vector<14x84xf32> to vector<10x84xf32>
    %c4_41 = arith.constant 4 : index
    %c0_42 = arith.constant 0 : index
    %c0_43 = arith.constant 0 : index
    %54 = vector.load %arg6[%c4_41, %c0_42, %c0_43] : memref<5x84x160xf32, #tpu.memory_space<vmem>>, vector<1x84x160xf32>
    %55 = vector.shape_cast %54 : vector<1x84x160xf32> to vector<84x160xf32>
    %cst_44 = arith.constant dense<0.000000e+00> : vector<10x160xf32>
    %56 = tpu.matmul %53, %55, %cst_44 {dimension_numbers = #tpu.dot_dimension_numbers<[1], [0], [0], [1], [0, 0, 1, 1], [], []>} : vector<10x84xf32>, vector<84x160xf32>, vector<10x160xf32> -> vector<10x160xf32>
    %57 = arith.addf %52, %56 : vector<10x160xf32>
    %c0_45 = arith.constant 0 : index
    %c0_46 = arith.constant 0 : index
    %58 = vector.load %arg7[%c0_45, %c0_46] : memref<1x160xf32, #tpu.memory_space<vmem>>, vector<1x160xf32>
    %59 = vector.broadcast %58 : vector<1x160xf32> to vector<10x160xf32>
    %60 = arith.addf %57, %59 : vector<10x160xf32>
    %61 = math.tanh %60 : vector<10x160xf32>
    %c0_47 = arith.constant 0 : index
    %c0_48 = arith.constant 0 : index
    %62 = vector.load %arg8[%c0_47, %c0_48] : memref<5x10xf32, #tpu.memory_space<vmem>>, vector<5x10xf32>
    %cst_49 = arith.constant dense<0.000000e+00> : vector<5x160xf32>
    %63 = tpu.matmul %62, %61, %cst_49 {dimension_numbers = #tpu.dot_dimension_numbers<[1], [0], [0], [1], [0, 0, 1, 1], [], []>} : vector<5x10xf32>, vector<10x160xf32>, vector<5x160xf32> -> vector<5x160xf32>
    %c0_50 = arith.constant 0 : index
    %c0_51 = arith.constant 0 : index
    %64 = vector.load %arg9[%c0_50, %c0_51] : memref<160x80xf32, #tpu.memory_space<vmem>>, vector<160x80xf32>
    %cst_52 = arith.constant dense<0.000000e+00> : vector<5x80xf32>
    %65 = tpu.matmul %63, %64, %cst_52 {dimension_numbers = #tpu.dot_dimension_numbers<[1], [0], [0], [1], [0, 0, 1, 1], [], []>} : vector<5x160xf32>, vector<160x80xf32>, vector<5x80xf32> -> vector<5x80xf32>
    %66 = vector.extract_strided_slice %65 {offsets = [0, 0], sizes = [1, 80], strides = [1, 1]} : vector<5x80xf32> to vector<1x80xf32>
    %c0_53 = arith.constant 0 : index
    %c0_54 = arith.constant 0 : index
    %c0_55 = arith.constant 0 : index
    %67 = vector.load %arg10[%c0_53, %c0_54, %c0_55] : memref<5x80x120xf32, #tpu.memory_space<vmem>>, vector<1x80x120xf32>
    %68 = vector.shape_cast %67 : vector<1x80x120xf32> to vector<80x120xf32>
    %cst_56 = arith.constant dense<0.000000e+00> : vector<1x120xf32>
    %69 = tpu.matmul %66, %68, %cst_56 {dimension_numbers = #tpu.dot_dimension_numbers<[1], [0], [0], [1], [0, 0, 1, 1], [], []>} : vector<1x80xf32>, vector<80x120xf32>, vector<1x120xf32> -> vector<1x120xf32>
    %70 = vector.extract_strided_slice %65 {offsets = [1, 0], sizes = [1, 80], strides = [1, 1]} : vector<5x80xf32> to vector<1x80xf32>
    %c1_57 = arith.constant 1 : index
    %c0_58 = arith.constant 0 : index
    %c0_59 = arith.constant 0 : index
    %71 = vector.load %arg10[%c1_57, %c0_58, %c0_59] : memref<5x80x120xf32, #tpu.memory_space<vmem>>, vector<1x80x120xf32>
    %72 = vector.shape_cast %71 : vector<1x80x120xf32> to vector<80x120xf32>
    %cst_60 = arith.constant dense<0.000000e+00> : vector<1x120xf32>
    %73 = tpu.matmul %70, %72, %cst_60 {dimension_numbers = #tpu.dot_dimension_numbers<[1], [0], [0], [1], [0, 0, 1, 1], [], []>} : vector<1x80xf32>, vector<80x120xf32>, vector<1x120xf32> -> vector<1x120xf32>
    %74 = arith.addf %69, %73 : vector<1x120xf32>
    %75 = vector.extract_strided_slice %65 {offsets = [2, 0], sizes = [1, 80], strides = [1, 1]} : vector<5x80xf32> to vector<1x80xf32>
    %c2_61 = arith.constant 2 : index
    %c0_62 = arith.constant 0 : index
    %c0_63 = arith.constant 0 : index
    %76 = vector.load %arg10[%c2_61, %c0_62, %c0_63] : memref<5x80x120xf32, #tpu.memory_space<vmem>>, vector<1x80x120xf32>
    %77 = vector.shape_cast %76 : vector<1x80x120xf32> to vector<80x120xf32>
    %cst_64 = arith.constant dense<0.000000e+00> : vector<1x120xf32>
    %78 = tpu.matmul %75, %77, %cst_64 {dimension_numbers = #tpu.dot_dimension_numbers<[1], [0], [0], [1], [0, 0, 1, 1], [], []>} : vector<1x80xf32>, vector<80x120xf32>, vector<1x120xf32> -> vector<1x120xf32>
    %79 = arith.addf %74, %78 : vector<1x120xf32>
    %80 = vector.extract_strided_slice %65 {offsets = [3, 0], sizes = [1, 80], strides = [1, 1]} : vector<5x80xf32> to vector<1x80xf32>
    %c3_65 = arith.constant 3 : index
    %c0_66 = arith.constant 0 : index
    %c0_67 = arith.constant 0 : index
    %81 = vector.load %arg10[%c3_65, %c0_66, %c0_67] : memref<5x80x120xf32, #tpu.memory_space<vmem>>, vector<1x80x120xf32>
    %82 = vector.shape_cast %81 : vector<1x80x120xf32> to vector<80x120xf32>
    %cst_68 = arith.constant dense<0.000000e+00> : vector<1x120xf32>
    %83 = tpu.matmul %80, %82, %cst_68 {dimension_numbers = #tpu.dot_dimension_numbers<[1], [0], [0], [1], [0, 0, 1, 1], [], []>} : vector<1x80xf32>, vector<80x120xf32>, vector<1x120xf32> -> vector<1x120xf32>
    %84 = arith.addf %79, %83 : vector<1x120xf32>
    %85 = vector.extract_strided_slice %65 {offsets = [4, 0], sizes = [1, 80], strides = [1, 1]} : vector<5x80xf32> to vector<1x80xf32>
    %c4_69 = arith.constant 4 : index
    %c0_70 = arith.constant 0 : index
    %c0_71 = arith.constant 0 : index
    %86 = vector.load %arg10[%c4_69, %c0_70, %c0_71] : memref<5x80x120xf32, #tpu.memory_space<vmem>>, vector<1x80x120xf32>
    %87 = vector.shape_cast %86 : vector<1x80x120xf32> to vector<80x120xf32>
    %cst_72 = arith.constant dense<0.000000e+00> : vector<1x120xf32>
    %88 = tpu.matmul %85, %87, %cst_72 {dimension_numbers = #tpu.dot_dimension_numbers<[1], [0], [0], [1], [0, 0, 1, 1], [], []>} : vector<1x80xf32>, vector<80x120xf32>, vector<1x120xf32> -> vector<1x120xf32>
    %89 = arith.addf %84, %88 : vector<1x120xf32>
    %c0_73 = arith.constant 0 : index
    %c0_74 = arith.constant 0 : index
    %90 = vector.load %arg11[%c0_73, %c0_74] : memref<1x120xf32, #tpu.memory_space<vmem>>, vector<1x120xf32>
    %91 = arith.addf %89, %90 : vector<1x120xf32>
    %92 = math.tanh %91 : vector<1x120xf32>
    %c0_75 = arith.constant 0 : index
    %c0_76 = arith.constant 0 : index
    %93 = vector.load %arg12[%c0_75, %c0_76] : memref<120x84xf32, #tpu.memory_space<vmem>>, vector<120x84xf32>
    %cst_77 = arith.constant dense<0.000000e+00> : vector<1x84xf32>
    %94 = tpu.matmul %92, %93, %cst_77 {dimension_numbers = #tpu.dot_dimension_numbers<[1], [0], [0], [1], [0, 0, 1, 1], [], []>} : vector<1x120xf32>, vector<120x84xf32>, vector<1x84xf32> -> vector<1x84xf32>
    %c0_78 = arith.constant 0 : index
    %c0_79 = arith.constant 0 : index
    %95 = vector.load %arg13[%c0_78, %c0_79] : memref<1x84xf32, #tpu.memory_space<vmem>>, vector<1x84xf32>
    %96 = arith.addf %94, %95 : vector<1x84xf32>
    %97 = math.tanh %96 : vector<1x84xf32>
    %c0_80 = arith.constant 0 : index
    %c0_81 = arith.constant 0 : index
    %98 = vector.load %arg14[%c0_80, %c0_81] : memref<84x10xf32, #tpu.memory_space<vmem>>, vector<84x10xf32>
    %cst_82 = arith.constant dense<0.000000e+00> : vector<1x10xf32>
    %99 = tpu.matmul %97, %98, %cst_82 {dimension_numbers = #tpu.dot_dimension_numbers<[1], [0], [0], [1], [0, 0, 1, 1], [], []>} : vector<1x84xf32>, vector<84x10xf32>, vector<1x10xf32> -> vector<1x10xf32>
    %c0_83 = arith.constant 0 : index
    %c0_84 = arith.constant 0 : index
    %100 = vector.load %arg15[%c0_83, %c0_84] : memref<1x10xf32, #tpu.memory_space<vmem>>, vector<1x10xf32>
    %101 = arith.addf %99, %100 : vector<1x10xf32>
    %c0_85 = arith.constant 0 : index
    %c0_86 = arith.constant 0 : index
    %c0_87 = arith.constant 0 : index
    %102 = vector.load %arg16[%c0_85, %c0_86, %c0_87] : memref<1x1x10xf32, #tpu.memory_space<vmem>>, vector<1x1x10xf32>
    %103 = vector.shape_cast %102 : vector<1x1x10xf32> to vector<1x10xf32>
    %104 = vector.shape_cast %101 : vector<1x10xf32> to vector<1x1x10xf32>
    tpu.vector_store %arg16[%c0_85, %c0_86, %c0_87], %104 {strides = array<i32>} : memref<1x1x10xf32, #tpu.memory_space<vmem>>, vector<1x1x10xf32>,
    return
  }
  func.func @transform_0(%arg0: i32) -> (i32, i32, i32) {
    %c0_i32 = arith.constant 0 : i32
    %c0_i32_0 = arith.constant 0 : i32
    %c0_i32_1 = arith.constant 0 : i32
    return %arg0, %c0_i32, %c0_i32_0 : i32, i32, i32
  }
  func.func @transform_1(%arg0: i32) -> (i32, i32, i32) {
    %c0_i32 = arith.constant 0 : i32
    %c0_i32_0 = arith.constant 0 : i32
    %c0_i32_1 = arith.constant 0 : i32
    %c0_i32_2 = arith.constant 0 : i32
    return %c0_i32, %c0_i32_0, %c0_i32_1 : i32, i32, i32
  }
  func.func @transform_2(%arg0: i32) -> (i32, i32) {
    %c0_i32 = arith.constant 0 : i32
    %c0_i32_0 = arith.constant 0 : i32
    %c0_i32_1 = arith.constant 0 : i32
    return %c0_i32, %c0_i32_0 : i32, i32
  }
  func.func @transform_3(%arg0: i32) -> (i32, i32) {
    %c0_i32 = arith.constant 0 : i32
    %c0_i32_0 = arith.constant 0 : i32
    %c0_i32_1 = arith.constant 0 : i32
    return %c0_i32, %c0_i32_0 : i32, i32
  }
  func.func @transform_4(%arg0: i32) -> (i32, i32) {
    %c0_i32 = arith.constant 0 : i32
    %c0_i32_0 = arith.constant 0 : i32
    %c0_i32_1 = arith.constant 0 : i32
    return %c0_i32, %c0_i32_0 : i32, i32
  }
  func.func @transform_5(%arg0: i32) -> (i32, i32, i32) {
    %c0_i32 = arith.constant 0 : i32
    %c0_i32_0 = arith.constant 0 : i32
    %c0_i32_1 = arith.constant 0 : i32
    %c0_i32_2 = arith.constant 0 : i32
    return %c0_i32, %c0_i32_0, %c0_i32_1 : i32, i32, i32
  }
  func.func @transform_6(%arg0: i32) -> (i32, i32) {
    %c0_i32 = arith.constant 0 : i32
    %c0_i32_0 = arith.constant 0 : i32
    %c0_i32_1 = arith.constant 0 : i32
    return %c0_i32, %c0_i32_0 : i32, i32
  }
  func.func @transform_7(%arg0: i32) -> (i32, i32) {
    %c0_i32 = arith.constant 0 : i32
    %c0_i32_0 = arith.constant 0 : i32
    %c0_i32_1 = arith.constant 0 : i32
    return %c0_i32, %c0_i32_0 : i32, i32
  }
  func.func @transform_8(%arg0: i32) -> (i32, i32) {
    %c0_i32 = arith.constant 0 : i32
    %c0_i32_0 = arith.constant 0 : i32
    %c0_i32_1 = arith.constant 0 : i32
    return %c0_i32, %c0_i32_0 : i32, i32
  }
  func.func @transform_9(%arg0: i32) -> (i32, i32, i32) {
    %c0_i32 = arith.constant 0 : i32
    %c0_i32_0 = arith.constant 0 : i32
    %c0_i32_1 = arith.constant 0 : i32
    %c0_i32_2 = arith.constant 0 : i32
    return %c0_i32, %c0_i32_0, %c0_i32_1 : i32, i32, i32
  }
  func.func @transform_10(%arg0: i32) -> (i32, i32) {
    %c0_i32 = arith.constant 0 : i32
    %c0_i32_0 = arith.constant 0 : i32
    %c0_i32_1 = arith.constant 0 : i32
    return %c0_i32, %c0_i32_0 : i32, i32
  }
  func.func @transform_11(%arg0: i32) -> (i32, i32) {
    %c0_i32 = arith.constant 0 : i32
    %c0_i32_0 = arith.constant 0 : i32
    %c0_i32_1 = arith.constant 0 : i32
    return %c0_i32, %c0_i32_0 : i32, i32
  }
  func.func @transform_12(%arg0: i32) -> (i32, i32) {
    %c0_i32 = arith.constant 0 : i32
    %c0_i32_0 = arith.constant 0 : i32
    %c0_i32_1 = arith.constant 0 : i32
    return %c0_i32, %c0_i32_0 : i32, i32
  }
  func.func @transform_13(%arg0: i32) -> (i32, i32) {
    %c0_i32 = arith.constant 0 : i32
    %c0_i32_0 = arith.constant 0 : i32
    %c0_i32_1 = arith.constant 0 : i32
    return %c0_i32, %c0_i32_0 : i32, i32
  }
  func.func @transform_14(%arg0: i32) -> (i32, i32) {
    %c0_i32 = arith.constant 0 : i32
    %c0_i32_0 = arith.constant 0 : i32
    %c0_i32_1 = arith.constant 0 : i32
    return %c0_i32, %c0_i32_0 : i32, i32
  }
  func.func @transform_15(%arg0: i32) -> (i32, i32, i32) {
    %c0_i32 = arith.constant 0 : i32
    %c0_i32_0 = arith.constant 0 : i32
    %c0_i32_1 = arith.constant 0 : i32
    return %arg0, %c0_i32, %c0_i32_0 : i32, i32, i32
  }
}

</mosaic_0001>

<llo_original>
// kernel: lenet5_forward.1
$region0: #{lenet5_forward.1}
  #allocation0 [shape = 'u32[]', space=smem, size = 0x4, offset = 0x4, fixed_abs, tag = 'smem constant byte address 0x4 - core index']
  #allocation1 [shape = 'u32[72,128]{1,0:T(1,128)}', space=vmem, size = 0x9000, scoped, tag = 'internal scratch']
  %s0 = inlined_call_operand.vmem [shape: f32[2,32,96], index: 0, kind: input, shape index: {}]
  %s1 = inlined_call_operand.vmem [shape: f32[5,96,168], index: 1, kind: input, shape index: {}]
  %s2 = inlined_call_operand.vmem [shape: f32[1,168], index: 2, kind: input, shape index: {}]
  %s3 = inlined_call_operand.vmem [shape: f32[14,28], index: 3, kind: input, shape index: {}]
  %s4 = inlined_call_operand.vmem [shape: f32[168,84], index: 4, kind: input, shape index: {}]
  %s5 = inlined_call_operand.vmem [shape: f32[5,84,160], index: 5, kind: input, shape index: {}]
  %s6 = inlined_call_operand.vmem [shape: f32[1,160], index: 6, kind: input, shape index: {}]
  %s7 = inlined_call_operand.vmem [shape: f32[5,10], index: 7, kind: input, shape index: {}]
  %s8 = inlined_call_operand.vmem [shape: f32[160,80], index: 8, kind: input, shape index: {}]
  %s9 = inlined_call_operand.vmem [shape: f32[5,80,120], index: 9, kind: input, shape index: {}]
  %s10 = inlined_call_operand.vmem [shape: f32[1,120], index: 10, kind: input, shape index: {}]
  %s11 = inlined_call_operand.vmem [shape: f32[120,84], index: 11, kind: input, shape index: {}]
  %s12 = inlined_call_operand.vmem [shape: f32[1,84], index: 12, kind: input, shape index: {}]
  %s13 = inlined_call_operand.vmem [shape: f32[84,10], index: 13, kind: input, shape index: {}]
  %s14 = inlined_call_operand.vmem [shape: f32[1,10], index: 14, kind: input, shape index: {}]
  %s15 = inlined_call_operand.hbm [shape: f32[2,1,10], index: 15, kind: output, shape index: {}]
  %s16 = sld [smem:[#allocation0]]
  $region93: #{lenet5_forward.1} parent=0
    _
  %s18 = ssub.s32 1, %s16
  %s19 = scalar_select 0, %s18, %s16
  $region1: #{lenet5_forward.1} parent=0
    #allocation2 [shape = 'u8[1024]{0}', space=vmem, size = 0x400, scoped, tag = 'output window, operand 0']
    #allocation3 [shape = 's32[2]{0}', space=sflag, size = 0x8, scoped, tag = 'scoped memory for lenet5_forward.1']
    %20 = vsyncpa [#allocation3], 0
    %s21 = scalar_lea.sflag [#allocation3], 1
    %22 = vsyncpa %s21, 0
    loop: start=0, step=1, limit=4
    $region2: #{lenet5_forward.1} parent=1 // loop_pre_header
      _
    $region3: #{lenet5_forward.1} parent=1 // loop_header
      %s24 = sphi 0, %s28
      %p25 = scmp.ge.s32.totalorder %s24, 4
      %s34 = sphi 0, %s36
      %s37 = sphi 0, %s34
      %s38 = sphi 0, %s37
      %s54 = sphi 0, %s38
      %s58 = sphi 0, %s58
      %s60 = sphi 0, %s58
      %s61 = sphi 0, %s60
      %s75 = sphi 0, %s61
      %s79 = sphi 0, %s79
      %s81 = sphi 0, %s79
      %s82 = sphi 0, %s81
      %s96 = sphi 0, %s82
      %s100 = sphi 0, %s100
      %s102 = sphi 0, %s100
      %s103 = sphi 0, %s102
      %s117 = sphi 0, %s103
      %s121 = sphi 0, %s121
      %s123 = sphi 0, %s121
      %s124 = sphi 0, %s123
      %s138 = sphi 0, %s124
      %s142 = sphi 0, %s142
      %s144 = sphi 0, %s142
      %s145 = sphi 0, %s144
      %s159 = sphi 0, %s145
      %s163 = sphi 0, %s163
      %s165 = sphi 0, %s163
      %s166 = sphi 0, %s165
      %s180 = sphi 0, %s166
      %s184 = sphi 0, %s184
      %s186 = sphi 0, %s184
      %s187 = sphi 0, %s186
      %s201 = sphi 0, %s187
      %s205 = sphi 0, %s205
      %s207 = sphi 0, %s205
      %s208 = sphi 0, %s207
      %s222 = sphi 0, %s208
      %s226 = sphi 0, %s226
      %s228 = sphi 0, %s226
      %s229 = sphi 0, %s228
      %s243 = sphi 0, %s229
      %s247 = sphi 0, %s247
      %s249 = sphi 0, %s247
      %s250 = sphi 0, %s249
      %s264 = sphi 0, %s250
      %s268 = sphi 0, %s268
      %s270 = sphi 0, %s268
      %s271 = sphi 0, %s270
      %s285 = sphi 0, %s271
      %s289 = sphi 0, %s289
      %s291 = sphi 0, %s289
      %s292 = sphi 0, %s291
      %s306 = sphi 0, %s292
      %s310 = sphi 0, %s310
      %s312 = sphi 0, %s310
      %s313 = sphi 0, %s312
      %s327 = sphi 0, %s313
      %s331 = sphi 0, %s331
      %s333 = sphi 0, %s331
      %s334 = sphi 0, %s333
      %s348 = sphi 0, %s334
      %s354 = sphi 0, %s356
      %s357 = sphi 0, %s354
      %s358 = sphi 0, %s357
      %s374 = sphi 0, %s358
    $region4: #{lenet5_forward.1} parent=1 // loop_header_branch
      %27 = sbr.rel (%p25) target = $region8
    $region5: #{lenet5_forward.1} parent=1 // loop_body
      %s29 = ssub.s32 %s24, 1
      %s30 = ssub.s32 %s24, 2
      %s31 = sadd.s32 %s24, 1
      %s32 = ssub.s32 %s24, %s31
      %p33 = scmp.eq.s32.totalorder %s32, 0
      %s35 = sadd.s32 %s34, 1
      %s36 = scalar_select %p33, %s34, %s35
      %p39 = pneg %p33
      %p40 = scmp.eq.s32.totalorder %s24, 1
      %p41 = por %p39, %p40
      %p42 = scmp.ne.s32.totalorder %s34, %s37
      %p43 = scmp.eq.s32.totalorder %s24, 0
      %p44 = por %p42, %p43
      %p45 = scmp.ne.s32.totalorder %s34, %s37
      %p46 = scmp.eq.s32.totalorder %s29, 1
      %p47 = por %p45, %p46
      %p48 = scmp.ne.s32.totalorder %s37, %s38
      %p49 = scmp.eq.s32.totalorder %s29, 0
      %p50 = por %p48, %p49
      %p51 = scmp.ne.s32.totalorder %s37, %s38
      %p52 = scmp.eq.s32.totalorder %s30, 1
      %p53 = por %p51, %p52
      %p55 = scmp.ne.s32.totalorder %s38, %s54
      %p56 = scmp.eq.s32.totalorder %s30, 0
      %p57 = por %p55, %p56
      %s59 = sadd.s32 %s58, 1
      %p62 = scmp.eq.s32.totalorder %s24, 1
      %p63 = scmp.ne.s32.totalorder %s58, %s60
      %p64 = scmp.eq.s32.totalorder %s24, 0
      %p65 = por %p63, %p64
      %p66 = scmp.ne.s32.totalorder %s58, %s60
      %p67 = scmp.eq.s32.totalorder %s29, 1
      %p68 = por %p66, %p67
      %p69 = scmp.ne.s32.totalorder %s60, %s61
      %p70 = scmp.eq.s32.totalorder %s29, 0
      %p71 = por %p69, %p70
      %p72 = scmp.ne.s32.totalorder %s60, %s61
      %p73 = scmp.eq.s32.totalorder %s30, 1
      %p74 = por %p72, %p73
      %p76 = scmp.ne.s32.totalorder %s61, %s75
      %p77 = scmp.eq.s32.totalorder %s30, 0
      %p78 = por %p76, %p77
      %s80 = sadd.s32 %s79, 1
      %p83 = scmp.eq.s32.totalorder %s24, 1
      %p84 = scmp.ne.s32.totalorder %s79, %s81
      %p85 = scmp.eq.s32.totalorder %s24, 0
      %p86 = por %p84, %p85
      %p87 = scmp.ne.s32.totalorder %s79, %s81
      %p88 = scmp.eq.s32.totalorder %s29, 1
      %p89 = por %p87, %p88
      %p90 = scmp.ne.s32.totalorder %s81, %s82
      %p91 = scmp.eq.s32.totalorder %s29, 0
      %p92 = por %p90, %p91
      %p93 = scmp.ne.s32.totalorder %s81, %s82
      %p94 = scmp.eq.s32.totalorder %s30, 1
      %p95 = por %p93, %p94
      %p97 = scmp.ne.s32.totalorder %s82, %s96
      %p98 = scmp.eq.s32.totalorder %s30, 0
      %p99 = por %p97, %p98
      %s101 = sadd.s32 %s100, 1
      %p104 = scmp.eq.s32.totalorder %s24, 1
      %p105 = scmp.ne.s32.totalorder %s100, %s102
      %p106 = scmp.eq.s32.totalorder %s24, 0
      %p107 = por %p105, %p106
      %p108 = scmp.ne.s32.totalorder %s100, %s102
      %p109 = scmp.eq.s32.totalorder %s29, 1
      %p110 = por %p108, %p109
      %p111 = scmp.ne.s32.totalorder %s102, %s103
      %p112 = scmp.eq.s32.totalorder %s29, 0
      %p113 = por %p111, %p112
      %p114 = scmp.ne.s32.totalorder %s102, %s103
      %p115 = scmp.eq.s32.totalorder %s30, 1
      %p116 = por %p114, %p115
      %p118 = scmp.ne.s32.totalorder %s103, %s117
      %p119 = scmp.eq.s32.totalorder %s30, 0
      %p120 = por %p118, %p119
      %s122 = sadd.s32 %s121, 1
      %p125 = scmp.eq.s32.totalorder %s24, 1
      %p126 = scmp.ne.s32.totalorder %s121, %s123
      %p127 = scmp.eq.s32.totalorder %s24, 0
      %p128 = por %p126, %p127
      %p129 = scmp.ne.s32.totalorder %s121, %s123
      %p130 = scmp.eq.s32.totalorder %s29, 1
      %p131 = por %p129, %p130
      %p132 = scmp.ne.s32.totalorder %s123, %s124
      %p133 = scmp.eq.s32.totalorder %s29, 0
      %p134 = por %p132, %p133
      %p135 = scmp.ne.s32.totalorder %s123, %s124
      %p136 = scmp.eq.s32.totalorder %s30, 1
      %p137 = por %p135, %p136
      %p139 = scmp.ne.s32.totalorder %s124, %s138
      %p140 = scmp.eq.s32.totalorder %s30, 0
      %p141 = por %p139, %p140
      %s143 = sadd.s32 %s142, 1
      %p146 = scmp.eq.s32.totalorder %s24, 1
      %p147 = scmp.ne.s32.totalorder %s142, %s144
      %p148 = scmp.eq.s32.totalorder %s24, 0
      %p149 = por %p147, %p148
      %p150 = scmp.ne.s32.totalorder %s142, %s144
      %p151 = scmp.eq.s32.totalorder %s29, 1
      %p152 = por %p150, %p151
      %p153 = scmp.ne.s32.totalorder %s144, %s145
      %p154 = scmp.eq.s32.totalorder %s29, 0
      %p155 = por %p153, %p154
      %p156 = scmp.ne.s32.totalorder %s144, %s145
      %p157 = scmp.eq.s32.totalorder %s30, 1
      %p158 = por %p156, %p157
      %p160 = scmp.ne.s32.totalorder %s145, %s159
      %p161 = scmp.eq.s32.totalorder %s30, 0
      %p162 = por %p160, %p161
      %s164 = sadd.s32 %s163, 1
      %p167 = scmp.eq.s32.totalorder %s24, 1
      %p168 = scmp.ne.s32.totalorder %s163, %s165
      %p169 = scmp.eq.s32.totalorder %s24, 0
      %p170 = por %p168, %p169
      %p171 = scmp.ne.s32.totalorder %s163, %s165
      %p172 = scmp.eq.s32.totalorder %s29, 1
      %p173 = por %p171, %p172
      %p174 = scmp.ne.s32.totalorder %s165, %s166
      %p175 = scmp.eq.s32.totalorder %s29, 0
      %p176 = por %p174, %p175
      %p177 = scmp.ne.s32.totalorder %s165, %s166
      %p178 = scmp.eq.s32.totalorder %s30, 1
      %p179 = por %p177, %p178
      %p181 = scmp.ne.s32.totalorder %s166, %s180
      %p182 = scmp.eq.s32.totalorder %s30, 0
      %p183 = por %p181, %p182
      %s185 = sadd.s32 %s184, 1
      %p188 = scmp.eq.s32.totalorder %s24, 1
      %p189 = scmp.ne.s32.totalorder %s184, %s186
      %p190 = scmp.eq.s32.totalorder %s24, 0
      %p191 = por %p189, %p190
      %p192 = scmp.ne.s32.totalorder %s184, %s186
      %p193 = scmp.eq.s32.totalorder %s29, 1
      %p194 = por %p192, %p193
      %p195 = scmp.ne.s32.totalorder %s186, %s187
      %p196 = scmp.eq.s32.totalorder %s29, 0
      %p197 = por %p195, %p196
      %p198 = scmp.ne.s32.totalorder %s186, %s187
      %p199 = scmp.eq.s32.totalorder %s30, 1
      %p200 = por %p198, %p199
      %p202 = scmp.ne.s32.totalorder %s187, %s201
      %p203 = scmp.eq.s32.totalorder %s30, 0
      %p204 = por %p202, %p203
      %s206 = sadd.s32 %s205, 1
      %p209 = scmp.eq.s32.totalorder %s24, 1
      %p210 = scmp.ne.s32.totalorder %s205, %s207
      %p211 = scmp.eq.s32.totalorder %s24, 0
      %p212 = por %p210, %p211
      %p213 = scmp.ne.s32.totalorder %s205, %s207
      %p214 = scmp.eq.s32.totalorder %s29, 1
      %p215 = por %p213, %p214
      %p216 = scmp.ne.s32.totalorder %s207, %s208
      %p217 = scmp.eq.s32.totalorder %s29, 0
      %p218 = por %p216, %p217
      %p219 = scmp.ne.s32.totalorder %s207, %s208
      %p220 = scmp.eq.s32.totalorder %s30, 1
      %p221 = por %p219, %p220
      %p223 = scmp.ne.s32.totalorder %s208, %s222
      %p224 = scmp.eq.s32.totalorder %s30, 0
      %p225 = por %p223, %p224
      %s227 = sadd.s32 %s226, 1
      %p230 = scmp.eq.s32.totalorder %s24, 1
      %p231 = scmp.ne.s32.totalorder %s226, %s228
      %p232 = scmp.eq.s32.totalorder %s24, 0
      %p233 = por %p231, %p232
      %p234 = scmp.ne.s32.totalorder %s226, %s228
      %p235 = scmp.eq.s32.totalorder %s29, 1
      %p236 = por %p234, %p235
      %p237 = scmp.ne.s32.totalorder %s228, %s229
      %p238 = scmp.eq.s32.totalorder %s29, 0
      %p239 = por %p237, %p238
      %p240 = scmp.ne.s32.totalorder %s228, %s229
      %p241 = scmp.eq.s32.totalorder %s30, 1
      %p242 = por %p240, %p241
      %p244 = scmp.ne.s32.totalorder %s229, %s243
      %p245 = scmp.eq.s32.totalorder %s30, 0
      %p246 = por %p244, %p245
      %s248 = sadd.s32 %s247, 1
      %p251 = scmp.eq.s32.totalorder %s24, 1
      %p252 = scmp.ne.s32.totalorder %s247, %s249
      %p253 = scmp.eq.s32.totalorder %s24, 0
      %p254 = por %p252, %p253
      %p255 = scmp.ne.s32.totalorder %s247, %s249
      %p256 = scmp.eq.s32.totalorder %s29, 1
      %p257 = por %p255, %p256
      %p258 = scmp.ne.s32.totalorder %s249, %s250
      %p259 = scmp.eq.s32.totalorder %s29, 0
      %p260 = por %p258, %p259
      %p261 = scmp.ne.s32.totalorder %s249, %s250
      %p262 = scmp.eq.s32.totalorder %s30, 1
      %p263 = por %p261, %p262
      %p265 = scmp.ne.s32.totalorder %s250, %s264
      %p266 = scmp.eq.s32.totalorder %s30, 0
      %p267 = por %p265, %p266
      %s269 = sadd.s32 %s268, 1
      %p272 = scmp.eq.s32.totalorder %s24, 1
      %p273 = scmp.ne.s32.totalorder %s268, %s270
      %p274 = scmp.eq.s32.totalorder %s24, 0
      %p275 = por %p273, %p274
      %p276 = scmp.ne.s32.totalorder %s268, %s270
      %p277 = scmp.eq.s32.totalorder %s29, 1
      %p278 = por %p276, %p277
      %p279 = scmp.ne.s32.totalorder %s270, %s271
      %p280 = scmp.eq.s32.totalorder %s29, 0
      %p281 = por %p279, %p280
      %p282 = scmp.ne.s32.totalorder %s270, %s271
      %p283 = scmp.eq.s32.totalorder %s30, 1
      %p284 = por %p282, %p283
      %p286 = scmp.ne.s32.totalorder %s271, %s285
      %p287 = scmp.eq.s32.totalorder %s30, 0
      %p288 = por %p286, %p287
      %s290 = sadd.s32 %s289, 1
      %p293 = scmp.eq.s32.totalorder %s24, 1
      %p294 = scmp.ne.s32.totalorder %s289, %s291
      %p295 = scmp.eq.s32.totalorder %s24, 0
      %p296 = por %p294, %p295
      %p297 = scmp.ne.s32.totalorder %s289, %s291
      %p298 = scmp.eq.s32.totalorder %s29, 1
      %p299 = por %p297, %p298
      %p300 = scmp.ne.s32.totalorder %s291, %s292
      %p301 = scmp.eq.s32.totalorder %s29, 0
      %p302 = por %p300, %p301
      %p303 = scmp.ne.s32.totalorder %s291, %s292
      %p304 = scmp.eq.s32.totalorder %s30, 1
      %p305 = por %p303, %p304
      %p307 = scmp.ne.s32.totalorder %s292, %s306
      %p308 = scmp.eq.s32.totalorder %s30, 0
      %p309 = por %p307, %p308
      %s311 = sadd.s32 %s310, 1
      %p314 = scmp.eq.s32.totalorder %s24, 1
      %p315 = scmp.ne.s32.totalorder %s310, %s312
      %p316 = scmp.eq.s32.totalorder %s24, 0
      %p317 = por %p315, %p316
      %p318 = scmp.ne.s32.totalorder %s310, %s312
      %p319 = scmp.eq.s32.totalorder %s29, 1
      %p320 = por %p318, %p319
      %p321 = scmp.ne.s32.totalorder %s312, %s313
      %p322 = scmp.eq.s32.totalorder %s29, 0
      %p323 = por %p321, %p322
      %p324 = scmp.ne.s32.totalorder %s312, %s313
      %p325 = scmp.eq.s32.totalorder %s30, 1
      %p326 = por %p324, %p325
      %p328 = scmp.ne.s32.totalorder %s313, %s327
      %p329 = scmp.eq.s32.totalorder %s30, 0
      %p330 = por %p328, %p329
      %s332 = sadd.s32 %s331, 1
      %p335 = scmp.eq.s32.totalorder %s24, 1
      %p336 = scmp.ne.s32.totalorder %s331, %s333
      %p337 = scmp.eq.s32.totalorder %s24, 0
      %p338 = por %p336, %p337
      %p339 = scmp.ne.s32.totalorder %s331, %s333
      %p340 = scmp.eq.s32.totalorder %s29, 1
      %p341 = por %p339, %p340
      %p342 = scmp.ne.s32.totalorder %s333, %s334
      %p343 = scmp.eq.s32.totalorder %s29, 0
      %p344 = por %p342, %p343
      %p345 = scmp.ne.s32.totalorder %s333, %s334
      %p346 = scmp.eq.s32.totalorder %s30, 1
      %p347 = por %p345, %p346
      %p349 = scmp.ne.s32.totalorder %s334, %s348
      %p350 = scmp.eq.s32.totalorder %s30, 0
      %p351 = por %p349, %p350
      %s352 = ssub.s32 %s24, %s31
      %p353 = scmp.eq.s32.totalorder %s352, 0
      %s355 = sadd.s32 %s354, 1
      %s356 = scalar_select %p353, %s354, %s355
      %p359 = pneg %p353
      %p360 = scmp.eq.s32.totalorder %s24, 1
      %p361 = por %p359, %p360
      %p362 = scmp.ne.s32.totalorder %s354, %s357
      %p363 = scmp.eq.s32.totalorder %s24, 0
      %p364 = por %p362, %p363
      %p365 = scmp.ne.s32.totalorder %s354, %s357
      %p366 = scmp.eq.s32.totalorder %s29, 1
      %p367 = por %p365, %p366
      %p368 = scmp.ne.s32.totalorder %s357, %s358
      %p369 = scmp.eq.s32.totalorder %s29, 0
      %p370 = por %p368, %p369
      %p371 = scmp.ne.s32.totalorder %s357, %s358
      %p372 = scmp.eq.s32.totalorder %s30, 1
      %p373 = por %p371, %p372
      %p375 = scmp.ne.s32.totalorder %s358, %s374
      %p376 = scmp.eq.s32.totalorder %s30, 0
      %p377 = por %p375, %p376
      %p378 = scmp.le.s32.totalorder 1, %s24
      %p379 = scmp.lt.s32.totalorder %s24, 3
      %p380 = pnand %p378, %p379
      %p381 = pneg %p380
      // Predicated region
      $region9: #{lenet5_forward.1} parent=5 // pred_check
        _
      $region10: #{lenet5_forward.1} parent=5 // pred_check_branch
        %383 = sbr.rel (%p380) target = $region12
      $region11: #{lenet5_forward.1} parent=5 // pred_region
        %s384 = ssub.s32 %s24, 1
        // Predicated region
        $region13: #{lenet5_forward.1} parent=11 // pred_check
          %p385 = pneg %p71
        $region14: #{lenet5_forward.1} parent=11 // pred_check_branch
          %387 = sbr.rel (%p385) target = $region16
        $region15: #{lenet5_forward.1} parent=11 // pred_region
          _
        $region16: #{lenet5_forward.1} parent=11 // pred_fallthru
          _
        // Predicated region
        $region17: #{lenet5_forward.1} parent=11 // pred_check
          %p388 = pneg %p92
        $region18: #{lenet5_forward.1} parent=11 // pred_check_branch
          %390 = sbr.rel (%p388) target = $region20
        $region19: #{lenet5_forward.1} parent=11 // pred_region
          _
        $region20: #{lenet5_forward.1} parent=11 // pred_fallthru
          _
        // Predicated region
        $region21: #{lenet5_forward.1} parent=11 // pred_check
          %p391 = pneg %p113
        $region22: #{lenet5_forward.1} parent=11 // pred_check_branch
          %393 = sbr.rel (%p391) target = $region24
        $region23: #{lenet5_forward.1} parent=11 // pred_region
          _
        $region24: #{lenet5_forward.1} parent=11 // pred_fallthru
          _
        // Predicated region
        $region25: #{lenet5_forward.1} parent=11 // pred_check
          %p394 = pneg %p134
        $region26: #{lenet5_forward.1} parent=11 // pred_check_branch
          %396 = sbr.rel (%p394) target = $region28
        $region27: #{lenet5_forward.1} parent=11 // pred_region
          _
        $region28: #{lenet5_forward.1} parent=11 // pred_fallthru
          _
        // Predicated region
        $region29: #{lenet5_forward.1} parent=11 // pred_check
          %p397 = pneg %p155
        $region30: #{lenet5_forward.1} parent=11 // pred_check_branch
          %399 = sbr.rel (%p397) target = $region32
        $region31: #{lenet5_forward.1} parent=11 // pred_region
          _
        $region32: #{lenet5_forward.1} parent=11 // pred_fallthru
          _
        // Predicated region
        $region33: #{lenet5_forward.1} parent=11 // pred_check
          %p400 = pneg %p176
        $region34: #{lenet5_forward.1} parent=11 // pred_check_branch
          %402 = sbr.rel (%p400) target = $region36
        $region35: #{lenet5_forward.1} parent=11 // pred_region
          _
        $region36: #{lenet5_forward.1} parent=11 // pred_fallthru
          _
        // Predicated region
        $region37: #{lenet5_forward.1} parent=11 // pred_check
          %p403 = pneg %p197
        $region38: #{lenet5_forward.1} parent=11 // pred_check_branch
          %405 = sbr.rel (%p403) target = $region40
        $region39: #{lenet5_forward.1} parent=11 // pred_region
          _
        $region40: #{lenet5_forward.1} parent=11 // pred_fallthru
          _
        // Predicated region
        $region41: #{lenet5_forward.1} parent=11 // pred_check
          %p406 = pneg %p218
        $region42: #{lenet5_forward.1} parent=11 // pred_check_branch
          %408 = sbr.rel (%p406) target = $region44
        $region43: #{lenet5_forward.1} parent=11 // pred_region
          _
        $region44: #{lenet5_forward.1} parent=11 // pred_fallthru
          _
        // Predicated region
        $region45: #{lenet5_forward.1} parent=11 // pred_check
          %p409 = pneg %p239
        $region46: #{lenet5_forward.1} parent=11 // pred_check_branch
          %411 = sbr.rel (%p409) target = $region48
        $region47: #{lenet5_forward.1} parent=11 // pred_region
          _
        $region48: #{lenet5_forward.1} parent=11 // pred_fallthru
          _
        // Predicated region
        $region49: #{lenet5_forward.1} parent=11 // pred_check
          %p412 = pneg %p260
        $region50: #{lenet5_forward.1} parent=11 // pred_check_branch
          %414 = sbr.rel (%p412) target = $region52
        $region51: #{lenet5_forward.1} parent=11 // pred_region
          _
        $region52: #{lenet5_forward.1} parent=11 // pred_fallthru
          _
        // Predicated region
        $region53: #{lenet5_forward.1} parent=11 // pred_check
          %p415 = pneg %p281
        $region54: #{lenet5_forward.1} parent=11 // pred_check_branch
          %417 = sbr.rel (%p415) target = $region56
        $region55: #{lenet5_forward.1} parent=11 // pred_region
          _
        $region56: #{lenet5_forward.1} parent=11 // pred_fallthru
          _
        // Predicated region
        $region57: #{lenet5_forward.1} parent=11 // pred_check
          %p418 = pneg %p302
        $region58: #{lenet5_forward.1} parent=11 // pred_check_branch
          %420 = sbr.rel (%p418) target = $region60
        $region59: #{lenet5_forward.1} parent=11 // pred_region
          _
        $region60: #{lenet5_forward.1} parent=11 // pred_fallthru
          _
        // Predicated region
        $region61: #{lenet5_forward.1} parent=11 // pred_check
          %p421 = pneg %p323
        $region62: #{lenet5_forward.1} parent=11 // pred_check_branch
          %423 = sbr.rel (%p421) target = $region64
        $region63: #{lenet5_forward.1} parent=11 // pred_region
          _
        $region64: #{lenet5_forward.1} parent=11 // pred_fallthru
          _
        // Predicated region
        $region65: #{lenet5_forward.1} parent=11 // pred_check
          %p424 = pneg %p344
        $region66: #{lenet5_forward.1} parent=11 // pred_check_branch
          %426 = sbr.rel (%p424) target = $region68
        $region67: #{lenet5_forward.1} parent=11 // pred_region
          _
        $region68: #{lenet5_forward.1} parent=11 // pred_fallthru
          _
      $region12: #{lenet5_forward.1} parent=5 // pred_fallthru
        _
      %p427 = scmp.lt.s32.totalorder %s24, 2
      // Predicated region
      $region69: #{lenet5_forward.1} parent=5 // pred_check
        %p428 = pneg %p427
      $region70: #{lenet5_forward.1} parent=5 // pred_check_branch
        %430 = sbr.rel (%p428) target = $region72
      $region71: #{lenet5_forward.1} parent=5 // pred_region
        // Predicated region
        $region73: #{lenet5_forward.1} parent=71 // pred_check
          %p431 = pneg %p44
        $region74: #{lenet5_forward.1} parent=71 // pred_check_branch
          %433 = sbr.rel (%p431) target = $region76
        $region75: #{lenet5_forward.1} parent=71 // pred_region
          %p434 = scmp.lt.s32.totalorder %s24, 1
          %s435 = scalar_select %p434, %s24, 1
          %s436 = smul.addr %s435, 4
          %s437 = smul.addr %s436, 8
          %s438 = scalar_lea.vmem %s0, %s437
        $region76: #{lenet5_forward.1} parent=71 // pred_fallthru
          _
      $region72: #{lenet5_forward.1} parent=5 // pred_fallthru
        _
      %p439 = scmp.le.s32.totalorder 1, %s24
      %p440 = scmp.lt.s32.totalorder %s24, 3
      %p441 = pnand %p439, %p440
      %p442 = pneg %p441
      // Predicated region
      $region77: #{lenet5_forward.1} parent=5 // pred_check
        _
      $region78: #{lenet5_forward.1} parent=5 // pred_check_branch
        %444 = sbr.rel (%p441) target = $region80
      $region79: #{lenet5_forward.1} parent=5 // pred_region
        %s445 = ssub.s32 %s24, 1
        %p446 = scmp.lt.s32.totalorder %s29, 1
        %s447 = scalar_select %p446, %s29, 1
        %s448 = smul.addr %s447, 4
        %s449 = smul.addr %s448, 8
        %s450 = scalar_lea.vmem %s0, %s449
        %p451 = pneg %p50
        %p452 = pneg %p47
        %p453 = pneg %p71
        %p454 = pneg %p68
        %p455 = pneg %p92
        %p456 = pneg %p89
        %p457 = pneg %p113
        %p458 = pneg %p110
        %p459 = pneg %p134
        %p460 = pneg %p131
        %p461 = pneg %p155
        %p462 = pneg %p152
        %p463 = pneg %p176
        %p464 = pneg %p173
        %p465 = pneg %p197
        %p466 = pneg %p194
        %p467 = pneg %p218
        %p468 = pneg %p215
        %p469 = pneg %p239
        %p470 = pneg %p236
        %p471 = pneg %p260
        %p472 = pneg %p257
        %p473 = pneg %p281
        %p474 = pneg %p278
        %p475 = pneg %p302
        %p476 = pneg %p299
        %p477 = pneg %p323
        %p478 = pneg %p320
        %p479 = pneg %p344
        %p480 = pneg %p341
        %p481 = pneg %p370
        %p482 = pneg %p367
        %s483 = sand.u32 %s357, 1
        %s484 = scalar_lea.sflag [#allocation3], %s483
        %s485 = sand.u32 %s357, 1
        %s486 = scalar_lea.vmem [#allocation2], %s485
        %p487 = scmp.lt.s32.totalorder %s29, 1
        %s488 = scalar_select %p487, %s29, 1
        %s489 = smul.addr %s488, 4
        %s490 = smul.addr %s489, 8
        %s491 = scalar_lea.vmem %s0, %s490
        %v492 = vld [vmem:[%s491] sm:$0xff]
        %v493 = vld [vmem:[%s491 + $0x8] sm:$0xff]
        %v494 = vld [vmem:[%s491 + $0x10] sm:$0xff]
        %v495 = vld [vmem:[%s491 + $0x18] sm:$0xff]
        %v496 = vld [vmem:[%s1] sm:$0xff]
        %v497 = vld [vmem:[%s1 + $0x8] sm:$0xff]
        %v498 = vld [vmem:[%s1 + $0x10] sm:$0xff]
        %v499 = vld [vmem:[%s1 + $0x18] sm:$0xff]
        %v500 = vld [vmem:[%s1 + $0x20] sm:$0xff]
        %v501 = vld [vmem:[%s1 + $0x28] sm:$0xff]
        %v502 = vld [vmem:[%s1 + $0x30] sm:$0xff]
        %v503 = vld [vmem:[%s1 + $0x38] sm:$0xff]
        %v504 = vld [vmem:[%s1 + $0x40] sm:$0xff]
        %v505 = vld [vmem:[%s1 + $0x48] sm:$0xff]
        %v506 = vld [vmem:[%s1 + $0x50] sm:$0xff]
        %v507 = vld [vmem:[%s1 + $0x58] sm:$0xff]
        %v508 = vld [vmem:[%s1 + $0x60] sm:$0xff]
        %v509 = vld [vmem:[%s1 + $0x68] sm:$0xff]
        %v510 = vld [vmem:[%s1 + $0x70] sm:$0xff]
        %v511 = vld [vmem:[%s1 + $0x78] sm:$0xff]
        %v512 = vld [vmem:[%s1 + $0x80] sm:$0xff]
        %v513 = vld [vmem:[%s1 + $0x88] sm:$0xff]
        %v514 = vld [vmem:[%s1 + $0x90] sm:$0xff]
        %v515 = vld [vmem:[%s1 + $0x98] sm:$0xff]
        %v516 = vld [vmem:[%s1 + $0xa0] sm:$0xff]
        %v517 = vld [vmem:[%s1 + $0xa8] sm:$0xff]
        %v518 = vld [vmem:[%s1 + $0xb0] sm:$0xff]
        %v519 = vld [vmem:[%s1 + $0xb8] sm:$0xff]
        %s520 = scalar_lea.vmem %s1, 192
        %v521 = vld [vmem:[%s520] sm:$0xff]
        %v522 = vld [vmem:[%s520 + $0x8] sm:$0xff]
        %v523 = vld [vmem:[%s520 + $0x10] sm:$0xff]
        %v524 = vld [vmem:[%s520 + $0x18] sm:$0xff]
        %v525 = vld [vmem:[%s520 + $0x20] sm:$0xff]
        %v526 = vld [vmem:[%s520 + $0x28] sm:$0xff]
        %v527 = vld [vmem:[%s520 + $0x30] sm:$0xff]
        %v528 = vld [vmem:[%s520 + $0x38] sm:$0xff]
        %v529 = vld [vmem:[%s520 + $0x40] sm:$0xff]
        %v530 = vld [vmem:[%s520 + $0x48] sm:$0xff]
        %v531 = vld [vmem:[%s520 + $0x50] sm:$0xff]
        %v532 = vld [vmem:[%s520 + $0x58] sm:$0xff]
        %v533 = vld [vmem:[%s520 + $0x60] sm:$0xff]
        %v534 = vld [vmem:[%s520 + $0x68] sm:$0xff]
        %v535 = vld [vmem:[%s520 + $0x70] sm:$0xff]
        %v536 = vld [vmem:[%s520 + $0x78] sm:$0xff]
        %v537 = vld [vmem:[%s520 + $0x80] sm:$0xff]
        %v538 = vld [vmem:[%s520 + $0x88] sm:$0xff]
        %v539 = vld [vmem:[%s520 + $0x90] sm:$0xff]
        %v540 = vld [vmem:[%s520 + $0x98] sm:$0xff]
        %v541 = vld [vmem:[%s520 + $0xa0] sm:$0xff]
        %v542 = vld [vmem:[%s520 + $0xa8] sm:$0xff]
        %v543 = vld [vmem:[%s520 + $0xb0] sm:$0xff]
        %v544 = vld [vmem:[%s520 + $0xb8] sm:$0xff]
        %vm549 = vcmask 1046528
        %v550 = vrot.slane %v492, 1
        %v551 = vrot.slane %v493, 1
        %v552 = vsel %vm549, %v550, %v551
        %v553 = vrot.slane %v494, 1
        %v554 = vsel %vm549, %v551, %v553
        %v555 = vrot.slane %v495, 1
        %v556 = vsel %vm549, %v553, %v555
        %vm557 = vcmask 785408
        %v558 = vsel %vm557, %v552, 0
        %v560 = vsel %vm557, %v554, 0
        %v562 = vsel %vm557, %v556, 0
        %v564 = vsel %vm557, %v555, 0
        %566 = vmatpush.msra.mxu0 0.0
        %567 = vmatpush.msra.mxu0 0.0
        %568 = vmatpush.msra.mxu0 0.0
        %569 = vmatpush.msra.mxu0 0.0
        %570 = vmatpush.msra.mxu0 %v543
        %571 = vmatpush.msra.mxu0 %v541
        %572 = vmatpush.msra.mxu0 %v539
        %573 = vmatpush.msra.mxu0 %v537
        %574 = vmatpush.msra.mxu0 %v535
        %575 = vmatpush.msra.mxu0 %v533
        %576 = vmatpush.msra.mxu0 %v531
        %577 = vmatpush.msra.mxu0 %v529
        %578 = vmatpush.msra.mxu0 %v527
        %579 = vmatpush.msra.mxu0 %v525
        %580 = vmatpush.msra.mxu0 %v523
        %581 = vmatpush.msra.mxu0 %v521
        %582 = vmatmul.f32.gmra.mxu0 %v558
        %v583 = vpop.f32.mrf.mxu0
        %v584 = vadd.f32 0.0, %v583
        %585 = vmatmul.f32.gmra.mxu0 %v560
        %v586 = vpop.f32.mrf.mxu0
        %v587 = vadd.f32 0.0, %v586
        %588 = vmatmul.f32.gmra.mxu0 %v562
        %v589 = vpop.f32.mrf.mxu0
        %v590 = vadd.f32 0.0, %v589
        %591 = vmatmul.f32.gmra.mxu0 %v564
        %v592 = vpop.f32.mrf.mxu0
        %v593 = vadd.f32 0.0, %v592
        %594 = vdwg.mxu0
        %595 = vmatpush.msra.mxu0 0.0
        %596 = vmatpush.msra.mxu0 0.0
        %597 = vmatpush.msra.mxu0 0.0
        %598 = vmatpush.msra.mxu0 0.0
        %599 = vmatpush.msra.mxu0 %v544
        %600 = vmatpush.msra.mxu0 %v542
        %601 = vmatpush.msra.mxu0 %v540
        %602 = vmatpush.msra.mxu0 %v538
        %603 = vmatpush.msra.mxu0 %v536
        %604 = vmatpush.msra.mxu0 %v534
        %605 = vmatpush.msra.mxu0 %v532
        %606 = vmatpush.msra.mxu0 %v530
        %607 = vmatpush.msra.mxu0 %v528
        %608 = vmatpush.msra.mxu0 %v526
        %609 = vmatpush.msra.mxu0 %v524
        %610 = vmatpush.msra.mxu0 %v522
        %611 = vmatmul.f32.gmra.mxu0 %v558
        %v612 = vpop.f32.mrf.mxu0
        %v613 = vadd.f32 0.0, %v612
        %614 = vmatmul.f32.gmra.mxu0 %v560
        %v615 = vpop.f32.mrf.mxu0
        %v616 = vadd.f32 0.0, %v615
        %617 = vmatmul.f32.gmra.mxu0 %v562
        %v618 = vpop.f32.mrf.mxu0
        %v619 = vadd.f32 0.0, %v618
        %620 = vmatmul.f32.gmra.mxu0 %v564
        %v621 = vpop.f32.mrf.mxu0
        %v622 = vadd.f32 0.0, %v621
        %623 = vdwg.mxu0
        %v624 = vsel %vm557, %v492, 0
        %v626 = vsel %vm557, %v493, 0
        %v628 = vsel %vm557, %v494, 0
        %v630 = vsel %vm557, %v495, 0
        %632 = vmatpush.msra.mxu0 0.0
        %633 = vmatpush.msra.mxu0 0.0
        %634 = vmatpush.msra.mxu0 0.0
        %635 = vmatpush.msra.mxu0 0.0
        %636 = vmatpush.msra.mxu0 %v518
        %637 = vmatpush.msra.mxu0 %v516
        %638 = vmatpush.msra.mxu0 %v514
        %639 = vmatpush.msra.mxu0 %v512
        %640 = vmatpush.msra.mxu0 %v510
        %641 = vmatpush.msra.mxu0 %v508
        %642 = vmatpush.msra.mxu0 %v506
        %643 = vmatpush.msra.mxu0 %v504
        %644 = vmatpush.msra.mxu0 %v502
        %645 = vmatpush.msra.mxu0 %v500
        %646 = vmatpush.msra.mxu0 %v498
        %647 = vmatpush.msra.mxu0 %v496
        %648 = vmatmul.f32.gmra.mxu0 %v624
        %v649 = vpop.f32.mrf.mxu0
        %v650 = vadd.f32 %v584, %v649
        %651 = vmatmul.f32.gmra.mxu0 %v626
        %v652 = vpop.f32.mrf.mxu0
        %v653 = vadd.f32 %v587, %v652
        %654 = vmatmul.f32.gmra.mxu0 %v628
        %v655 = vpop.f32.mrf.mxu0
        %v656 = vadd.f32 %v590, %v655
        %657 = vmatmul.f32.gmra.mxu0 %v630
        %v658 = vpop.f32.mrf.mxu0
        %v659 = vadd.f32 %v593, %v658
        %660 = vdwg.mxu0
        %661 = vmatpush.msra.mxu0 0.0
        %662 = vmatpush.msra.mxu0 0.0
        %663 = vmatpush.msra.mxu0 0.0
        %664 = vmatpush.msra.mxu0 0.0
        %665 = vmatpush.msra.mxu0 %v519
        %666 = vmatpush.msra.mxu0 %v517
        %667 = vmatpush.msra.mxu0 %v515
        %668 = vmatpush.msra.mxu0 %v513
        %669 = vmatpush.msra.mxu0 %v511
        %670 = vmatpush.msra.mxu0 %v509
        %671 = vmatpush.msra.mxu0 %v507
        %672 = vmatpush.msra.mxu0 %v505
        %673 = vmatpush.msra.mxu0 %v503
        %674 = vmatpush.msra.mxu0 %v501
        %675 = vmatpush.msra.mxu0 %v499
        %676 = vmatpush.msra.mxu0 %v497
        %677 = vmatmul.f32.gmra.mxu0 %v624
        %v678 = vpop.f32.mrf.mxu0
        %v679 = vadd.f32 %v613, %v678
        %680 = vmatmul.f32.gmra.mxu0 %v626
        %v681 = vpop.f32.mrf.mxu0
        %v682 = vadd.f32 %v616, %v681
        %683 = vmatmul.f32.gmra.mxu0 %v628
        %v684 = vpop.f32.mrf.mxu0
        %v685 = vadd.f32 %v619, %v684
        %686 = vmatmul.f32.gmra.mxu0 %v630
        %v687 = vpop.f32.mrf.mxu0
        %v688 = vadd.f32 %v622, %v687
        %689 = vdwg.mxu0
        %s690 = scalar_lea.vmem %s1, 384
        %v691 = vld [vmem:[%s690] sm:$0xff]
        %v692 = vld [vmem:[%s690 + $0x8] sm:$0xff]
        %v693 = vld [vmem:[%s690 + $0x10] sm:$0xff]
        %v694 = vld [vmem:[%s690 + $0x18] sm:$0xff]
        %v695 = vld [vmem:[%s690 + $0x20] sm:$0xff]
        %v696 = vld [vmem:[%s690 + $0x28] sm:$0xff]
        %v697 = vld [vmem:[%s690 + $0x30] sm:$0xff]
        %v698 = vld [vmem:[%s690 + $0x38] sm:$0xff]
        %v699 = vld [vmem:[%s690 + $0x40] sm:$0xff]
        %v700 = vld [vmem:[%s690 + $0x48] sm:$0xff]
        %v701 = vld [vmem:[%s690 + $0x50] sm:$0xff]
        %v702 = vld [vmem:[%s690 + $0x58] sm:$0xff]
        %v703 = vld [vmem:[%s690 + $0x60] sm:$0xff]
        %v704 = vld [vmem:[%s690 + $0x68] sm:$0xff]
        %v705 = vld [vmem:[%s690 + $0x70] sm:$0xff]
        %v706 = vld [vmem:[%s690 + $0x78] sm:$0xff]
        %v707 = vld [vmem:[%s690 + $0x80] sm:$0xff]
        %v708 = vld [vmem:[%s690 + $0x88] sm:$0xff]
        %v709 = vld [vmem:[%s690 + $0x90] sm:$0xff]
        %v710 = vld [vmem:[%s690 + $0x98] sm:$0xff]
        %v711 = vld [vmem:[%s690 + $0xa0] sm:$0xff]
        %v712 = vld [vmem:[%s690 + $0xa8] sm:$0xff]
        %v713 = vld [vmem:[%s690 + $0xb0] sm:$0xff]
        %v714 = vld [vmem:[%s690 + $0xb8] sm:$0xff]
        %vm715 = vcmask 1045504
        %v716 = vrot.slane %v492, 2
        %v717 = vrot.slane %v493, 2
        %v718 = vsel %vm715, %v716, %v717
        %v719 = vrot.slane %v494, 2
        %v720 = vsel %vm715, %v717, %v719
        %v721 = vrot.slane %v495, 2
        %v722 = vsel %vm715, %v719, %v721
        %v723 = vsel %vm557, %v718, 0
        %v725 = vsel %vm557, %v720, 0
        %v727 = vsel %vm557, %v722, 0
        %v729 = vsel %vm557, %v721, 0
        %731 = vmatpush.msra.mxu0 0.0
        %732 = vmatpush.msra.mxu0 0.0
        %733 = vmatpush.msra.mxu0 0.0
        %734 = vmatpush.msra.mxu0 0.0
        %735 = vmatpush.msra.mxu0 %v713
        %736 = vmatpush.msra.mxu0 %v711
        %737 = vmatpush.msra.mxu0 %v709
        %738 = vmatpush.msra.mxu0 %v707
        %739 = vmatpush.msra.mxu0 %v705
        %740 = vmatpush.msra.mxu0 %v703
        %741 = vmatpush.msra.mxu0 %v701
        %742 = vmatpush.msra.mxu0 %v699
        %743 = vmatpush.msra.mxu0 %v697
        %744 = vmatpush.msra.mxu0 %v695
        %745 = vmatpush.msra.mxu0 %v693
        %746 = vmatpush.msra.mxu0 %v691
        %747 = vmatmul.f32.gmra.mxu0 %v723
        %v748 = vpop.f32.mrf.mxu0
        %v749 = vadd.f32 0.0, %v748
        %750 = vmatmul.f32.gmra.mxu0 %v725
        %v751 = vpop.f32.mrf.mxu0
        %v752 = vadd.f32 0.0, %v751
        %753 = vmatmul.f32.gmra.mxu0 %v727
        %v754 = vpop.f32.mrf.mxu0
        %v755 = vadd.f32 0.0, %v754
        %756 = vmatmul.f32.gmra.mxu0 %v729
        %v757 = vpop.f32.mrf.mxu0
        %v758 = vadd.f32 0.0, %v757
        %759 = vdwg.mxu0
        %760 = vmatpush.msra.mxu0 0.0
        %761 = vmatpush.msra.mxu0 0.0
        %762 = vmatpush.msra.mxu0 0.0
        %763 = vmatpush.msra.mxu0 0.0
        %764 = vmatpush.msra.mxu0 %v714
        %765 = vmatpush.msra.mxu0 %v712
        %766 = vmatpush.msra.mxu0 %v710
        %767 = vmatpush.msra.mxu0 %v708
        %768 = vmatpush.msra.mxu0 %v706
        %769 = vmatpush.msra.mxu0 %v704
        %770 = vmatpush.msra.mxu0 %v702
        %771 = vmatpush.msra.mxu0 %v700
        %772 = vmatpush.msra.mxu0 %v698
        %773 = vmatpush.msra.mxu0 %v696
        %774 = vmatpush.msra.mxu0 %v694
        %775 = vmatpush.msra.mxu0 %v692
        %776 = vmatmul.f32.gmra.mxu0 %v723
        %v777 = vpop.f32.mrf.mxu0
        %v778 = vadd.f32 0.0, %v777
        %779 = vmatmul.f32.gmra.mxu0 %v725
        %v780 = vpop.f32.mrf.mxu0
        %v781 = vadd.f32 0.0, %v780
        %782 = vmatmul.f32.gmra.mxu0 %v727
        %v783 = vpop.f32.mrf.mxu0
        %v784 = vadd.f32 0.0, %v783
        %785 = vmatmul.f32.gmra.mxu0 %v729
        %v786 = vpop.f32.mrf.mxu0
        %v787 = vadd.f32 0.0, %v786
        %788 = vdwg.mxu0
        %v789 = vadd.f32 %v650, %v749
        %v790 = vadd.f32 %v679, %v778
        %v791 = vadd.f32 %v653, %v752
        %v792 = vadd.f32 %v682, %v781
        %v793 = vadd.f32 %v656, %v755
        %v794 = vadd.f32 %v685, %v784
        %v795 = vadd.f32 %v659, %v758
        %v796 = vadd.f32 %v688, %v787
        %s797 = scalar_lea.vmem %s1, 576
        %v798 = vld [vmem:[%s797] sm:$0xff]
        %v799 = vld [vmem:[%s797 + $0x8] sm:$0xff]
        %v800 = vld [vmem:[%s797 + $0x10] sm:$0xff]
        %v801 = vld [vmem:[%s797 + $0x18] sm:$0xff]
        %v802 = vld [vmem:[%s797 + $0x20] sm:$0xff]
        %v803 = vld [vmem:[%s797 + $0x28] sm:$0xff]
        %v804 = vld [vmem:[%s797 + $0x30] sm:$0xff]
        %v805 = vld [vmem:[%s797 + $0x38] sm:$0xff]
        %v806 = vld [vmem:[%s797 + $0x40] sm:$0xff]
        %v807 = vld [vmem:[%s797 + $0x48] sm:$0xff]
        %v808 = vld [vmem:[%s797 + $0x50] sm:$0xff]
        %v809 = vld [vmem:[%s797 + $0x58] sm:$0xff]
        %v810 = vld [vmem:[%s797 + $0x60] sm:$0xff]
        %v811 = vld [vmem:[%s797 + $0x68] sm:$0xff]
        %v812 = vld [vmem:[%s797 + $0x70] sm:$0xff]
        %v813 = vld [vmem:[%s797 + $0x78] sm:$0xff]
        %v814 = vld [vmem:[%s797 + $0x80] sm:$0xff]
        %v815 = vld [vmem:[%s797 + $0x88] sm:$0xff]
        %v816 = vld [vmem:[%s797 + $0x90] sm:$0xff]
        %v817 = vld [vmem:[%s797 + $0x98] sm:$0xff]
        %v818 = vld [vmem:[%s797 + $0xa0] sm:$0xff]
        %v819 = vld [vmem:[%s797 + $0xa8] sm:$0xff]
        %v820 = vld [vmem:[%s797 + $0xb0] sm:$0xff]
        %v821 = vld [vmem:[%s797 + $0xb8] sm:$0xff]
        %vm822 = vcmask 1044480
        %v823 = vrot.slane %v492, 3
        %v824 = vrot.slane %v493, 3
        %v825 = vsel %vm822, %v823, %v824
        %v826 = vrot.slane %v494, 3
        %v827 = vsel %vm822, %v824, %v826
        %v828 = vrot.slane %v495, 3
        %v829 = vsel %vm822, %v826, %v828
        %v830 = vsel %vm557, %v825, 0
        %v832 = vsel %vm557, %v827, 0
        %v834 = vsel %vm557, %v829, 0
        %v836 = vsel %vm557, %v828, 0
        %838 = vmatpush.msra.mxu0 0.0
        %839 = vmatpush.msra.mxu0 0.0
        %840 = vmatpush.msra.mxu0 0.0
        %841 = vmatpush.msra.mxu0 0.0
        %842 = vmatpush.msra.mxu0 %v820
        %843 = vmatpush.msra.mxu0 %v818
        %844 = vmatpush.msra.mxu0 %v816
        %845 = vmatpush.msra.mxu0 %v814
        %846 = vmatpush.msra.mxu0 %v812
        %847 = vmatpush.msra.mxu0 %v810
        %848 = vmatpush.msra.mxu0 %v808
        %849 = vmatpush.msra.mxu0 %v806
        %850 = vmatpush.msra.mxu0 %v804
        %851 = vmatpush.msra.mxu0 %v802
        %852 = vmatpush.msra.mxu0 %v800
        %853 = vmatpush.msra.mxu0 %v798
        %854 = vmatmul.f32.gmra.mxu0 %v830
        %v855 = vpop.f32.mrf.mxu0
        %v856 = vadd.f32 0.0, %v855
        %857 = vmatmul.f32.gmra.mxu0 %v832
        %v858 = vpop.f32.mrf.mxu0
        %v859 = vadd.f32 0.0, %v858
        %860 = vmatmul.f32.gmra.mxu0 %v834
        %v861 = vpop.f32.mrf.mxu0
        %v862 = vadd.f32 0.0, %v861
        %863 = vmatmul.f32.gmra.mxu0 %v836
        %v864 = vpop.f32.mrf.mxu0
        %v865 = vadd.f32 0.0, %v864
        %866 = vdwg.mxu0
        %867 = vmatpush.msra.mxu0 0.0
        %868 = vmatpush.msra.mxu0 0.0
        %869 = vmatpush.msra.mxu0 0.0
        %870 = vmatpush.msra.mxu0 0.0
        %871 = vmatpush.msra.mxu0 %v821
        %872 = vmatpush.msra.mxu0 %v819
        %873 = vmatpush.msra.mxu0 %v817
        %874 = vmatpush.msra.mxu0 %v815
        %875 = vmatpush.msra.mxu0 %v813
        %876 = vmatpush.msra.mxu0 %v811
        %877 = vmatpush.msra.mxu0 %v809
        %878 = vmatpush.msra.mxu0 %v807
        %879 = vmatpush.msra.mxu0 %v805
        %880 = vmatpush.msra.mxu0 %v803
        %881 = vmatpush.msra.mxu0 %v801
        %882 = vmatpush.msra.mxu0 %v799
        %883 = vmatmul.f32.gmra.mxu0 %v830
        %v884 = vpop.f32.mrf.mxu0
        %v885 = vadd.f32 0.0, %v884
        %886 = vmatmul.f32.gmra.mxu0 %v832
        %v887 = vpop.f32.mrf.mxu0
        %v888 = vadd.f32 0.0, %v887
        %889 = vmatmul.f32.gmra.mxu0 %v834
        %v890 = vpop.f32.mrf.mxu0
        %v891 = vadd.f32 0.0, %v890
        %892 = vmatmul.f32.gmra.mxu0 %v836
        %v893 = vpop.f32.mrf.mxu0
        %v894 = vadd.f32 0.0, %v893
        %895 = vdwg.mxu0
        %v896 = vadd.f32 %v789, %v856
        %v897 = vadd.f32 %v790, %v885
        %v898 = vadd.f32 %v791, %v859
        %v899 = vadd.f32 %v792, %v888
        %v900 = vadd.f32 %v793, %v862
        %v901 = vadd.f32 %v794, %v891
        %v902 = vadd.f32 %v795, %v865
        %v903 = vadd.f32 %v796, %v894
        %s904 = scalar_lea.vmem %s1, 768
        %v905 = vld [vmem:[%s904] sm:$0xff]
        %v906 = vld [vmem:[%s904 + $0x8] sm:$0xff]
        %v907 = vld [vmem:[%s904 + $0x10] sm:$0xff]
        %v908 = vld [vmem:[%s904 + $0x18] sm:$0xff]
        %v909 = vld [vmem:[%s904 + $0x20] sm:$0xff]
        %v910 = vld [vmem:[%s904 + $0x28] sm:$0xff]
        %v911 = vld [vmem:[%s904 + $0x30] sm:$0xff]
        %v912 = vld [vmem:[%s904 + $0x38] sm:$0xff]
        %v913 = vld [vmem:[%s904 + $0x40] sm:$0xff]
        %v914 = vld [vmem:[%s904 + $0x48] sm:$0xff]
        %v915 = vld [vmem:[%s904 + $0x50] sm:$0xff]
        %v916 = vld [vmem:[%s904 + $0x58] sm:$0xff]
        %v917 = vld [vmem:[%s904 + $0x60] sm:$0xff]
        %v918 = vld [vmem:[%s904 + $0x68] sm:$0xff]
        %v919 = vld [vmem:[%s904 + $0x70] sm:$0xff]
        %v920 = vld [vmem:[%s904 + $0x78] sm:$0xff]
        %v921 = vld [vmem:[%s904 + $0x80] sm:$0xff]
        %v922 = vld [vmem:[%s904 + $0x88] sm:$0xff]
        %v923 = vld [vmem:[%s904 + $0x90] sm:$0xff]
        %v924 = vld [vmem:[%s904 + $0x98] sm:$0xff]
        %v925 = vld [vmem:[%s904 + $0xa0] sm:$0xff]
        %v926 = vld [vmem:[%s904 + $0xa8] sm:$0xff]
        %v927 = vld [vmem:[%s904 + $0xb0] sm:$0xff]
        %v928 = vld [vmem:[%s904 + $0xb8] sm:$0xff]
        %vm929 = vcmask 1043456
        %v930 = vrot.slane %v492, 4
        %v931 = vrot.slane %v493, 4
        %v932 = vsel %vm929, %v930, %v931
        %v933 = vrot.slane %v494, 4
        %v934 = vsel %vm929, %v931, %v933
        %v935 = vrot.slane %v495, 4
        %v936 = vsel %vm929, %v933, %v935
        %v937 = vsel %vm557, %v932, 0
        %v939 = vsel %vm557, %v934, 0
        %v941 = vsel %vm557, %v936, 0
        %v943 = vsel %vm557, %v935, 0
        %945 = vmatpush.msra.mxu0 0.0
        %946 = vmatpush.msra.mxu0 0.0
        %947 = vmatpush.msra.mxu0 0.0
        %948 = vmatpush.msra.mxu0 0.0
        %949 = vmatpush.msra.mxu0 %v927
        %950 = vmatpush.msra.mxu0 %v925
        %951 = vmatpush.msra.mxu0 %v923
        %952 = vmatpush.msra.mxu0 %v921
        %953 = vmatpush.msra.mxu0 %v919
        %954 = vmatpush.msra.mxu0 %v917
        %955 = vmatpush.msra.mxu0 %v915
        %956 = vmatpush.msra.mxu0 %v913
        %957 = vmatpush.msra.mxu0 %v911
        %958 = vmatpush.msra.mxu0 %v909
        %959 = vmatpush.msra.mxu0 %v907
        %960 = vmatpush.msra.mxu0 %v905
        %961 = vmatmul.f32.gmra.mxu0 %v937
        %v962 = vpop.f32.mrf.mxu0
        %v963 = vadd.f32 0.0, %v962
        %964 = vmatmul.f32.gmra.mxu0 %v939
        %v965 = vpop.f32.mrf.mxu0
        %v966 = vadd.f32 0.0, %v965
        %967 = vmatmul.f32.gmra.mxu0 %v941
        %v968 = vpop.f32.mrf.mxu0
        %v969 = vadd.f32 0.0, %v968
        %970 = vmatmul.f32.gmra.mxu0 %v943
        %v971 = vpop.f32.mrf.mxu0
        %v972 = vadd.f32 0.0, %v971
        %973 = vdwg.mxu0
        %974 = vmatpush.msra.mxu0 0.0
        %975 = vmatpush.msra.mxu0 0.0
        %976 = vmatpush.msra.mxu0 0.0
        %977 = vmatpush.msra.mxu0 0.0
        %978 = vmatpush.msra.mxu0 %v928
        %979 = vmatpush.msra.mxu0 %v926
        %980 = vmatpush.msra.mxu0 %v924
        %981 = vmatpush.msra.mxu0 %v922
        %982 = vmatpush.msra.mxu0 %v920
        %983 = vmatpush.msra.mxu0 %v918
        %984 = vmatpush.msra.mxu0 %v916
        %985 = vmatpush.msra.mxu0 %v914
        %986 = vmatpush.msra.mxu0 %v912
        %987 = vmatpush.msra.mxu0 %v910
        %988 = vmatpush.msra.mxu0 %v908
        %989 = vmatpush.msra.mxu0 %v906
        %990 = vmatmul.f32.gmra.mxu0 %v937
        %v991 = vpop.f32.mrf.mxu0
        %v992 = vadd.f32 0.0, %v991
        %993 = vmatmul.f32.gmra.mxu0 %v939
        %v994 = vpop.f32.mrf.mxu0
        %v995 = vadd.f32 0.0, %v994
        %996 = vmatmul.f32.gmra.mxu0 %v941
        %v997 = vpop.f32.mrf.mxu0
        %v998 = vadd.f32 0.0, %v997
        %999 = vmatmul.f32.gmra.mxu0 %v943
        %v1000 = vpop.f32.mrf.mxu0
        %v1001 = vadd.f32 0.0, %v1000
        %1002 = vdwg.mxu0
        %v1003 = vadd.f32 %v896, %v963
        %v1004 = vadd.f32 %v897, %v992
        %v1005 = vadd.f32 %v898, %v966
        %v1006 = vadd.f32 %v899, %v995
        %v1007 = vadd.f32 %v900, %v969
        %v1008 = vadd.f32 %v901, %v998
        %v1009 = vadd.f32 %v902, %v972
        %v1010 = vadd.f32 %v903, %v1001
        %v1011 = vld [vmem:[%s2] sm:$0x3]
        %v1013 = vperm.slane %v1011, 0
        %v1014 = vperm.slane %v1011, 1
        %v1017 = vadd.f32 %v1003, %v1013
        %v1018 = vadd.f32 %v1004, %v1014
        %v1019 = vadd.f32 %v1005, %v1013
        %v1020 = vadd.f32 %v1006, %v1014
        %v1021 = vadd.f32 %v1007, %v1013
        %v1022 = vadd.f32 %v1008, %v1014
        %v1023 = vadd.f32 %v1009, %v1013
        %v1024 = vadd.f32 %v1010, %v1014
        %v1025 = vtanh.pop %v1017
        %v1026 = vtanh.pop %v1018
        %v1027 = vtanh.pop %v1019
        %v1028 = vtanh.pop %v1020
        %v1029 = vtanh.pop %v1021
        %v1030 = vtanh.pop %v1022
        %v1031 = vtanh.pop %v1023
        %v1032 = vtanh.pop %v1024
        %v1033 = vld [vmem:[%s3] sm:$0xff]
        %v1034 = vld [vmem:[%s3 + $0x8] sm:$0x3f]
        %vm1035 = vcmask 228352
        %v1037 = vsel %vm1035, %v1033, 0
        %v1040 = vsel %vm1035, %v1034, 0
        %v1043 = vsel %vm929, %v1031, 0
        %v1046 = vsel %vm929, %v1032, 0
        %1048 = vmatpush.msra.mxu0 0.0
        %1049 = vmatpush.msra.mxu0 0.0
        %1050 = vmatpush.msra.mxu0 0.0
        %1051 = vmatpush.msra.mxu0 0.0
        %1052 = vmatpush.msra.mxu0 0.0
        %1053 = vmatpush.msra.mxu0 0.0
        %1054 = vmatpush.msra.mxu0 0.0
        %1055 = vmatpush.msra.mxu0 0.0
        %1056 = vmatpush.msra.mxu0 0.0
        %1057 = vmatpush.msra.mxu0 0.0
        %1058 = vmatpush.msra.mxu0 0.0
        %1059 = vmatpush.msra.mxu0 0.0
        %1060 = vmatpush.msra.mxu0 %v1043
        %1061 = vmatpush.msra.mxu0 %v1029
        %1062 = vmatpush.msra.mxu0 %v1027
        %1063 = vmatpush.msra.mxu0 %v1025
        %1064 = vmatmul.f32.gmra.mxu0 %v1037
        %v1065 = vpop.f32.mrf.mxu0
        %v1066 = vadd.f32 0.0, %v1065
        %1067 = vmatmul.f32.gmra.mxu0 %v1040
        %v1068 = vpop.f32.mrf.mxu0
        %v1069 = vadd.f32 0.0, %v1068
        %1070 = vdwg.mxu0
        %1071 = vmatpush.msra.mxu0 0.0
        %1072 = vmatpush.msra.mxu0 0.0
        %1073 = vmatpush.msra.mxu0 0.0
        %1074 = vmatpush.msra.mxu0 0.0
        %1075 = vmatpush.msra.mxu0 0.0
        %1076 = vmatpush.msra.mxu0 0.0
        %1077 = vmatpush.msra.mxu0 0.0
        %1078 = vmatpush.msra.mxu0 0.0
        %1079 = vmatpush.msra.mxu0 0.0
        %1080 = vmatpush.msra.mxu0 0.0
        %1081 = vmatpush.msra.mxu0 0.0
        %1082 = vmatpush.msra.mxu0 0.0
        %1083 = vmatpush.msra.mxu0 %v1046
        %1084 = vmatpush.msra.mxu0 %v1030
        %1085 = vmatpush.msra.mxu0 %v1028
        %1086 = vmatpush.msra.mxu0 %v1026
        %1087 = vmatmul.f32.gmra.mxu0 %v1037
        %v1088 = vpop.f32.mrf.mxu0
        %v1089 = vadd.f32 0.0, %v1088
        %1090 = vmatmul.f32.gmra.mxu0 %v1040
        %v1091 = vpop.f32.mrf.mxu0
        %v1092 = vadd.f32 0.0, %v1091
        %1093 = vdwg.mxu0
        %v1094 = vld [vmem:[%s4] sm:$0xff]
        %v1095 = vld [vmem:[%s4 + $0x8] sm:$0xff]
        %v1096 = vld [vmem:[%s4 + $0x10] sm:$0xff]
        %v1097 = vld [vmem:[%s4 + $0x18] sm:$0xff]
        %v1098 = vld [vmem:[%s4 + $0x20] sm:$0xff]
        %v1099 = vld [vmem:[%s4 + $0x28] sm:$0xff]
        %v1100 = vld [vmem:[%s4 + $0x30] sm:$0xff]
        %v1101 = vld [vmem:[%s4 + $0x38] sm:$0xff]
        %v1102 = vld [vmem:[%s4 + $0x40] sm:$0xff]
        %v1103 = vld [vmem:[%s4 + $0x48] sm:$0xff]
        %v1104 = vld [vmem:[%s4 + $0x50] sm:$0xff]
        %v1105 = vld [vmem:[%s4 + $0x58] sm:$0xff]
        %v1106 = vld [vmem:[%s4 + $0x60] sm:$0xff]
        %v1107 = vld [vmem:[%s4 + $0x68] sm:$0xff]
        %v1108 = vld [vmem:[%s4 + $0x70] sm:$0xff]
        %v1109 = vld [vmem:[%s4 + $0x78] sm:$0xff]
        %v1110 = vld [vmem:[%s4 + $0x80] sm:$0xff]
        %v1111 = vld [vmem:[%s4 + $0x88] sm:$0xff]
        %v1112 = vld [vmem:[%s4 + $0x90] sm:$0xff]
        %v1113 = vld [vmem:[%s4 + $0x98] sm:$0xff]
        %v1114 = vld [vmem:[%s4 + $0xa0] sm:$0xff]
        %vm1115 = vcmask 326656
        %v1117 = vsel %vm1115, %v1089, 0
        %v1120 = vsel %vm1115, %v1092, 0
        %1122 = vmatpush.msra.mxu0 %v1109
        %1123 = vmatpush.msra.mxu0 %v1108
        %1124 = vmatpush.msra.mxu0 %v1107
        %1125 = vmatpush.msra.mxu0 %v1106
        %1126 = vmatpush.msra.mxu0 %v1105
        %1127 = vmatpush.msra.mxu0 %v1104
        %1128 = vmatpush.msra.mxu0 %v1103
        %1129 = vmatpush.msra.mxu0 %v1102
        %1130 = vmatpush.msra.mxu0 %v1101
        %1131 = vmatpush.msra.mxu0 %v1100
        %1132 = vmatpush.msra.mxu0 %v1099
        %1133 = vmatpush.msra.mxu0 %v1098
        %1134 = vmatpush.msra.mxu0 %v1097
        %1135 = vmatpush.msra.mxu0 %v1096
        %1136 = vmatpush.msra.mxu0 %v1095
        %1137 = vmatpush.msra.mxu0 %v1094
        %1138 = vmatmul.f32.gmra.mxu0 %v1066
        %v1139 = vpop.f32.mrf.mxu0
        %v1140 = vadd.f32 0.0, %v1139
        %1141 = vmatmul.f32.gmra.mxu0 %v1069
        %v1142 = vpop.f32.mrf.mxu0
        %v1143 = vadd.f32 0.0, %v1142
        %1144 = vdwg.mxu0
        %1145 = vmatpush.msra.mxu0 0.0
        %1146 = vmatpush.msra.mxu0 0.0
        %1147 = vmatpush.msra.mxu0 0.0
        %1148 = vmatpush.msra.mxu0 0.0
        %1149 = vmatpush.msra.mxu0 0.0
        %1150 = vmatpush.msra.mxu0 0.0
        %1151 = vmatpush.msra.mxu0 0.0
        %1152 = vmatpush.msra.mxu0 0.0
        %1153 = vmatpush.msra.mxu0 0.0
        %1154 = vmatpush.msra.mxu0 0.0
        %1155 = vmatpush.msra.mxu0 0.0
        %1156 = vmatpush.msra.mxu0 %v1114
        %1157 = vmatpush.msra.mxu0 %v1113
        %1158 = vmatpush.msra.mxu0 %v1112
        %1159 = vmatpush.msra.mxu0 %v1111
        %1160 = vmatpush.msra.mxu0 %v1110
        %1161 = vmatmul.f32.gmra.mxu0 %v1117
        %v1162 = vpop.f32.mrf.mxu0
        %v1163 = vadd.f32 %v1140, %v1162
        %1164 = vmatmul.f32.gmra.mxu0 %v1120
        %v1165 = vpop.f32.mrf.mxu0
        %v1166 = vadd.f32 %v1143, %v1165
        %1167 = vdwg.mxu0
        %v1168 = vld [vmem:[%s5] sm:$0xff]
        %v1169 = vld [vmem:[%s5 + $0x8] sm:$0xff]
        %v1170 = vld [vmem:[%s5 + $0x10] sm:$0xff]
        %v1171 = vld [vmem:[%s5 + $0x18] sm:$0xff]
        %v1172 = vld [vmem:[%s5 + $0x20] sm:$0xff]
        %v1173 = vld [vmem:[%s5 + $0x28] sm:$0xff]
        %v1174 = vld [vmem:[%s5 + $0x30] sm:$0xff]
        %v1175 = vld [vmem:[%s5 + $0x38] sm:$0xff]
        %v1176 = vld [vmem:[%s5 + $0x40] sm:$0xff]
        %v1177 = vld [vmem:[%s5 + $0x48] sm:$0xff]
        %v1178 = vld [vmem:[%s5 + $0x50] sm:$0xff]
        %v1179 = vld [vmem:[%s5 + $0x58] sm:$0xff]
        %v1180 = vld [vmem:[%s5 + $0x60] sm:$0xff]
        %v1181 = vld [vmem:[%s5 + $0x68] sm:$0xff]
        %v1182 = vld [vmem:[%s5 + $0x70] sm:$0xff]
        %v1183 = vld [vmem:[%s5 + $0x78] sm:$0xff]
        %v1184 = vld [vmem:[%s5 + $0x80] sm:$0xff]
        %v1185 = vld [vmem:[%s5 + $0x88] sm:$0xff]
        %v1186 = vld [vmem:[%s5 + $0x90] sm:$0xff]
        %v1187 = vld [vmem:[%s5 + $0x98] sm:$0xff]
        %v1188 = vld [vmem:[%s5 + $0xa0] sm:$0xf]
        %v1189 = vld [vmem:[%s5 + $0xa8] sm:$0xf]
        %s1190 = scalar_lea.vmem %s5, 176
        %v1191 = vld [vmem:[%s1190] sm:$0xff]
        %v1192 = vld [vmem:[%s1190 + $0x8] sm:$0xff]
        %v1193 = vld [vmem:[%s1190 + $0x10] sm:$0xff]
        %v1194 = vld [vmem:[%s1190 + $0x18] sm:$0xff]
        %v1195 = vld [vmem:[%s1190 + $0x20] sm:$0xff]
        %v1196 = vld [vmem:[%s1190 + $0x28] sm:$0xff]
        %v1197 = vld [vmem:[%s1190 + $0x30] sm:$0xff]
        %v1198 = vld [vmem:[%s1190 + $0x38] sm:$0xff]
        %v1199 = vld [vmem:[%s1190 + $0x40] sm:$0xff]
        %v1200 = vld [vmem:[%s1190 + $0x48] sm:$0xff]
        %v1201 = vld [vmem:[%s1190 + $0x50] sm:$0xff]
        %v1202 = vld [vmem:[%s1190 + $0x58] sm:$0xff]
        %v1203 = vld [vmem:[%s1190 + $0x60] sm:$0xff]
        %v1204 = vld [vmem:[%s1190 + $0x68] sm:$0xff]
        %v1205 = vld [vmem:[%s1190 + $0x70] sm:$0xff]
        %v1206 = vld [vmem:[%s1190 + $0x78] sm:$0xff]
        %v1207 = vld [vmem:[%s1190 + $0x80] sm:$0xff]
        %v1208 = vld [vmem:[%s1190 + $0x88] sm:$0xff]
        %v1209 = vld [vmem:[%s1190 + $0x90] sm:$0xff]
        %v1210 = vld [vmem:[%s1190 + $0x98] sm:$0xff]
        %v1211 = vld [vmem:[%s1190 + $0xa0] sm:$0xf]
        %v1212 = vld [vmem:[%s1190 + $0xa8] sm:$0xf]
        %v1215 = vrot.slane %v1163, 1
        %v1216 = vrot.slane %v1166, 1
        %v1217 = vsel %vm549, %v1215, %v1216
        %vm1218 = vcmask 687104
        %v1219 = vsel %vm1218, %v1217, 0
        %v1221 = vsel %vm1218, %v1216, 0
        %v1224 = vsel %vm929, %v1211, 0
        %v1227 = vsel %vm929, %v1212, 0
        %1229 = vmatpush.msra.mxu0 0.0
        %1230 = vmatpush.msra.mxu0 0.0
        %1231 = vmatpush.msra.mxu0 0.0
        %1232 = vmatpush.msra.mxu0 0.0
        %1233 = vmatpush.msra.mxu0 0.0
        %1234 = vmatpush.msra.mxu0 %v1224
        %1235 = vmatpush.msra.mxu0 %v1209
        %1236 = vmatpush.msra.mxu0 %v1207
        %1237 = vmatpush.msra.mxu0 %v1205
        %1238 = vmatpush.msra.mxu0 %v1203
        %1239 = vmatpush.msra.mxu0 %v1201
        %1240 = vmatpush.msra.mxu0 %v1199
        %1241 = vmatpush.msra.mxu0 %v1197
        %1242 = vmatpush.msra.mxu0 %v1195
        %1243 = vmatpush.msra.mxu0 %v1193
        %1244 = vmatpush.msra.mxu0 %v1191
        %1245 = vmatmul.f32.gmra.mxu0 %v1219
        %v1246 = vpop.f32.mrf.mxu0
        %v1247 = vadd.f32 0.0, %v1246
        %1248 = vmatmul.f32.gmra.mxu0 %v1221
        %v1249 = vpop.f32.mrf.mxu0
        %v1250 = vadd.f32 0.0, %v1249
        %1251 = vdwg.mxu0
        %1252 = vmatpush.msra.mxu0 0.0
        %1253 = vmatpush.msra.mxu0 0.0
        %1254 = vmatpush.msra.mxu0 0.0
        %1255 = vmatpush.msra.mxu0 0.0
        %1256 = vmatpush.msra.mxu0 0.0
        %1257 = vmatpush.msra.mxu0 %v1227
        %1258 = vmatpush.msra.mxu0 %v1210
        %1259 = vmatpush.msra.mxu0 %v1208
        %1260 = vmatpush.msra.mxu0 %v1206
        %1261 = vmatpush.msra.mxu0 %v1204
        %1262 = vmatpush.msra.mxu0 %v1202
        %1263 = vmatpush.msra.mxu0 %v1200
        %1264 = vmatpush.msra.mxu0 %v1198
        %1265 = vmatpush.msra.mxu0 %v1196
        %1266 = vmatpush.msra.mxu0 %v1194
        %1267 = vmatpush.msra.mxu0 %v1192
        %1268 = vmatmul.f32.gmra.mxu0 %v1219
        %v1269 = vpop.f32.mrf.mxu0
        %v1270 = vadd.f32 0.0, %v1269
        %1271 = vmatmul.f32.gmra.mxu0 %v1221
        %v1272 = vpop.f32.mrf.mxu0
        %v1273 = vadd.f32 0.0, %v1272
        %1274 = vdwg.mxu0
        %v1275 = vsel %vm1218, %v1163, 0
        %v1277 = vsel %vm1218, %v1166, 0
        %v1280 = vsel %vm929, %v1188, 0
        %v1283 = vsel %vm929, %v1189, 0
        %1285 = vmatpush.msra.mxu0 0.0
        %1286 = vmatpush.msra.mxu0 0.0
        %1287 = vmatpush.msra.mxu0 0.0
        %1288 = vmatpush.msra.mxu0 0.0
        %1289 = vmatpush.msra.mxu0 0.0
        %1290 = vmatpush.msra.mxu0 %v1280
        %1291 = vmatpush.msra.mxu0 %v1186
        %1292 = vmatpush.msra.mxu0 %v1184
        %1293 = vmatpush.msra.mxu0 %v1182
        %1294 = vmatpush.msra.mxu0 %v1180
        %1295 = vmatpush.msra.mxu0 %v1178
        %1296 = vmatpush.msra.mxu0 %v1176
        %1297 = vmatpush.msra.mxu0 %v1174
        %1298 = vmatpush.msra.mxu0 %v1172
        %1299 = vmatpush.msra.mxu0 %v1170
        %1300 = vmatpush.msra.mxu0 %v1168
        %1301 = vmatmul.f32.gmra.mxu0 %v1275
        %v1302 = vpop.f32.mrf.mxu0
        %v1303 = vadd.f32 %v1247, %v1302
        %1304 = vmatmul.f32.gmra.mxu0 %v1277
        %v1305 = vpop.f32.mrf.mxu0
        %v1306 = vadd.f32 %v1250, %v1305
        %1307 = vdwg.mxu0
        %1308 = vmatpush.msra.mxu0 0.0
        %1309 = vmatpush.msra.mxu0 0.0
        %1310 = vmatpush.msra.mxu0 0.0
        %1311 = vmatpush.msra.mxu0 0.0
        %1312 = vmatpush.msra.mxu0 0.0
        %1313 = vmatpush.msra.mxu0 %v1283
        %1314 = vmatpush.msra.mxu0 %v1187
        %1315 = vmatpush.msra.mxu0 %v1185
        %1316 = vmatpush.msra.mxu0 %v1183
        %1317 = vmatpush.msra.mxu0 %v1181
        %1318 = vmatpush.msra.mxu0 %v1179
        %1319 = vmatpush.msra.mxu0 %v1177
        %1320 = vmatpush.msra.mxu0 %v1175
        %1321 = vmatpush.msra.mxu0 %v1173
        %1322 = vmatpush.msra.mxu0 %v1171
        %1323 = vmatpush.msra.mxu0 %v1169
        %1324 = vmatmul.f32.gmra.mxu0 %v1275
        %v1325 = vpop.f32.mrf.mxu0
        %v1326 = vadd.f32 %v1270, %v1325
        %1327 = vmatmul.f32.gmra.mxu0 %v1277
        %v1328 = vpop.f32.mrf.mxu0
        %v1329 = vadd.f32 %v1273, %v1328
        %1330 = vdwg.mxu0
        %s1331 = scalar_lea.vmem %s5, 352
        %v1332 = vld [vmem:[%s1331] sm:$0xff]
        %v1333 = vld [vmem:[%s1331 + $0x8] sm:$0xff]
        %v1334 = vld [vmem:[%s1331 + $0x10] sm:$0xff]
        %v1335 = vld [vmem:[%s1331 + $0x18] sm:$0xff]
        %v1336 = vld [vmem:[%s1331 + $0x20] sm:$0xff]
        %v1337 = vld [vmem:[%s1331 + $0x28] sm:$0xff]
        %v1338 = vld [vmem:[%s1331 + $0x30] sm:$0xff]
        %v1339 = vld [vmem:[%s1331 + $0x38] sm:$0xff]
        %v1340 = vld [vmem:[%s1331 + $0x40] sm:$0xff]
        %v1341 = vld [vmem:[%s1331 + $0x48] sm:$0xff]
        %v1342 = vld [vmem:[%s1331 + $0x50] sm:$0xff]
        %v1343 = vld [vmem:[%s1331 + $0x58] sm:$0xff]
        %v1344 = vld [vmem:[%s1331 + $0x60] sm:$0xff]
        %v1345 = vld [vmem:[%s1331 + $0x68] sm:$0xff]
        %v1346 = vld [vmem:[%s1331 + $0x70] sm:$0xff]
        %v1347 = vld [vmem:[%s1331 + $0x78] sm:$0xff]
        %v1348 = vld [vmem:[%s1331 + $0x80] sm:$0xff]
        %v1349 = vld [vmem:[%s1331 + $0x88] sm:$0xff]
        %v1350 = vld [vmem:[%s1331 + $0x90] sm:$0xff]
        %v1351 = vld [vmem:[%s1331 + $0x98] sm:$0xff]
        %v1352 = vld [vmem:[%s1331 + $0xa0] sm:$0xf]
        %v1353 = vld [vmem:[%s1331 + $0xa8] sm:$0xf]
        %v1354 = vrot.slane %v1163, 2
        %v1355 = vrot.slane %v1166, 2
        %v1356 = vsel %vm715, %v1354, %v1355
        %v1357 = vsel %vm1218, %v1356, 0
        %v1359 = vsel %vm1218, %v1355, 0
        %v1362 = vsel %vm929, %v1352, 0
        %v1365 = vsel %vm929, %v1353, 0
        %1367 = vmatpush.msra.mxu0 0.0
        %1368 = vmatpush.msra.mxu0 0.0
        %1369 = vmatpush.msra.mxu0 0.0
        %1370 = vmatpush.msra.mxu0 0.0
        %1371 = vmatpush.msra.mxu0 0.0
        %1372 = vmatpush.msra.mxu0 %v1362
        %1373 = vmatpush.msra.mxu0 %v1350
        %1374 = vmatpush.msra.mxu0 %v1348
        %1375 = vmatpush.msra.mxu0 %v1346
        %1376 = vmatpush.msra.mxu0 %v1344
        %1377 = vmatpush.msra.mxu0 %v1342
        %1378 = vmatpush.msra.mxu0 %v1340
        %1379 = vmatpush.msra.mxu0 %v1338
        %1380 = vmatpush.msra.mxu0 %v1336
        %1381 = vmatpush.msra.mxu0 %v1334
        %1382 = vmatpush.msra.mxu0 %v1332
        %1383 = vmatmul.f32.gmra.mxu0 %v1357
        %v1384 = vpop.f32.mrf.mxu0
        %v1385 = vadd.f32 0.0, %v1384
        %1386 = vmatmul.f32.gmra.mxu0 %v1359
        %v1387 = vpop.f32.mrf.mxu0
        %v1388 = vadd.f32 0.0, %v1387
        %1389 = vdwg.mxu0
        %1390 = vmatpush.msra.mxu0 0.0
        %1391 = vmatpush.msra.mxu0 0.0
        %1392 = vmatpush.msra.mxu0 0.0
        %1393 = vmatpush.msra.mxu0 0.0
        %1394 = vmatpush.msra.mxu0 0.0
        %1395 = vmatpush.msra.mxu0 %v1365
        %1396 = vmatpush.msra.mxu0 %v1351
        %1397 = vmatpush.msra.mxu0 %v1349
        %1398 = vmatpush.msra.mxu0 %v1347
        %1399 = vmatpush.msra.mxu0 %v1345
        %1400 = vmatpush.msra.mxu0 %v1343
        %1401 = vmatpush.msra.mxu0 %v1341
        %1402 = vmatpush.msra.mxu0 %v1339
        %1403 = vmatpush.msra.mxu0 %v1337
        %1404 = vmatpush.msra.mxu0 %v1335
        %1405 = vmatpush.msra.mxu0 %v1333
        %1406 = vmatmul.f32.gmra.mxu0 %v1357
        %v1407 = vpop.f32.mrf.mxu0
        %v1408 = vadd.f32 0.0, %v1407
        %1409 = vmatmul.f32.gmra.mxu0 %v1359
        %v1410 = vpop.f32.mrf.mxu0
        %v1411 = vadd.f32 0.0, %v1410
        %1412 = vdwg.mxu0
        %v1413 = vadd.f32 %v1303, %v1385
        %v1414 = vadd.f32 %v1326, %v1408
        %v1415 = vadd.f32 %v1306, %v1388
        %v1416 = vadd.f32 %v1329, %v1411
        %s1417 = scalar_lea.vmem %s5, 528
        %v1418 = vld [vmem:[%s1417] sm:$0xff]
        %v1419 = vld [vmem:[%s1417 + $0x8] sm:$0xff]
        %v1420 = vld [vmem:[%s1417 + $0x10] sm:$0xff]
        %v1421 = vld [vmem:[%s1417 + $0x18] sm:$0xff]
        %v1422 = vld [vmem:[%s1417 + $0x20] sm:$0xff]
        %v1423 = vld [vmem:[%s1417 + $0x28] sm:$0xff]
        %v1424 = vld [vmem:[%s1417 + $0x30] sm:$0xff]
        %v1425 = vld [vmem:[%s1417 + $0x38] sm:$0xff]
        %v1426 = vld [vmem:[%s1417 + $0x40] sm:$0xff]
        %v1427 = vld [vmem:[%s1417 + $0x48] sm:$0xff]
        %v1428 = vld [vmem:[%s1417 + $0x50] sm:$0xff]
        %v1429 = vld [vmem:[%s1417 + $0x58] sm:$0xff]
        %v1430 = vld [vmem:[%s1417 + $0x60] sm:$0xff]
        %v1431 = vld [vmem:[%s1417 + $0x68] sm:$0xff]
        %v1432 = vld [vmem:[%s1417 + $0x70] sm:$0xff]
        %v1433 = vld [vmem:[%s1417 + $0x78] sm:$0xff]
        %v1434 = vld [vmem:[%s1417 + $0x80] sm:$0xff]
        %v1435 = vld [vmem:[%s1417 + $0x88] sm:$0xff]
        %v1436 = vld [vmem:[%s1417 + $0x90] sm:$0xff]
        %v1437 = vld [vmem:[%s1417 + $0x98] sm:$0xff]
        %v1438 = vld [vmem:[%s1417 + $0xa0] sm:$0xf]
        %v1439 = vld [vmem:[%s1417 + $0xa8] sm:$0xf]
        %v1440 = vrot.slane %v1163, 3
        %v1441 = vrot.slane %v1166, 3
        %v1442 = vsel %vm822, %v1440, %v1441
        %v1443 = vsel %vm1218, %v1442, 0
        %v1445 = vsel %vm1218, %v1441, 0
        %v1448 = vsel %vm929, %v1438, 0
        %v1451 = vsel %vm929, %v1439, 0
        %1453 = vmatpush.msra.mxu0 0.0
        %1454 = vmatpush.msra.mxu0 0.0
        %1455 = vmatpush.msra.mxu0 0.0
        %1456 = vmatpush.msra.mxu0 0.0
        %1457 = vmatpush.msra.mxu0 0.0
        %1458 = vmatpush.msra.mxu0 %v1448
        %1459 = vmatpush.msra.mxu0 %v1436
        %1460 = vmatpush.msra.mxu0 %v1434
        %1461 = vmatpush.msra.mxu0 %v1432
        %1462 = vmatpush.msra.mxu0 %v1430
        %1463 = vmatpush.msra.mxu0 %v1428
        %1464 = vmatpush.msra.mxu0 %v1426
        %1465 = vmatpush.msra.mxu0 %v1424
        %1466 = vmatpush.msra.mxu0 %v1422
        %1467 = vmatpush.msra.mxu0 %v1420
        %1468 = vmatpush.msra.mxu0 %v1418
        %1469 = vmatmul.f32.gmra.mxu0 %v1443
        %v1470 = vpop.f32.mrf.mxu0
        %v1471 = vadd.f32 0.0, %v1470
        %1472 = vmatmul.f32.gmra.mxu0 %v1445
        %v1473 = vpop.f32.mrf.mxu0
        %v1474 = vadd.f32 0.0, %v1473
        %1475 = vdwg.mxu0
        %1476 = vmatpush.msra.mxu0 0.0
        %1477 = vmatpush.msra.mxu0 0.0
        %1478 = vmatpush.msra.mxu0 0.0
        %1479 = vmatpush.msra.mxu0 0.0
        %1480 = vmatpush.msra.mxu0 0.0
        %1481 = vmatpush.msra.mxu0 %v1451
        %1482 = vmatpush.msra.mxu0 %v1437
        %1483 = vmatpush.msra.mxu0 %v1435
        %1484 = vmatpush.msra.mxu0 %v1433
        %1485 = vmatpush.msra.mxu0 %v1431
        %1486 = vmatpush.msra.mxu0 %v1429
        %1487 = vmatpush.msra.mxu0 %v1427
        %1488 = vmatpush.msra.mxu0 %v1425
        %1489 = vmatpush.msra.mxu0 %v1423
        %1490 = vmatpush.msra.mxu0 %v1421
        %1491 = vmatpush.msra.mxu0 %v1419
        %1492 = vmatmul.f32.gmra.mxu0 %v1443
        %v1493 = vpop.f32.mrf.mxu0
        %v1494 = vadd.f32 0.0, %v1493
        %1495 = vmatmul.f32.gmra.mxu0 %v1445
        %v1496 = vpop.f32.mrf.mxu0
        %v1497 = vadd.f32 0.0, %v1496
        %1498 = vdwg.mxu0
        %v1499 = vadd.f32 %v1413, %v1471
        %v1500 = vadd.f32 %v1414, %v1494
        %v1501 = vadd.f32 %v1415, %v1474
        %v1502 = vadd.f32 %v1416, %v1497
        %s1503 = scalar_lea.vmem %s5, 704
        %v1504 = vld [vmem:[%s1503] sm:$0xff]
        %v1505 = vld [vmem:[%s1503 + $0x8] sm:$0xff]
        %v1506 = vld [vmem:[%s1503 + $0x10] sm:$0xff]
        %v1507 = vld [vmem:[%s1503 + $0x18] sm:$0xff]
        %v1508 = vld [vmem:[%s1503 + $0x20] sm:$0xff]
        %v1509 = vld [vmem:[%s1503 + $0x28] sm:$0xff]
        %v1510 = vld [vmem:[%s1503 + $0x30] sm:$0xff]
        %v1511 = vld [vmem:[%s1503 + $0x38] sm:$0xff]
        %v1512 = vld [vmem:[%s1503 + $0x40] sm:$0xff]
        %v1513 = vld [vmem:[%s1503 + $0x48] sm:$0xff]
        %v1514 = vld [vmem:[%s1503 + $0x50] sm:$0xff]
        %v1515 = vld [vmem:[%s1503 + $0x58] sm:$0xff]
        %v1516 = vld [vmem:[%s1503 + $0x60] sm:$0xff]
        %v1517 = vld [vmem:[%s1503 + $0x68] sm:$0xff]
        %v1518 = vld [vmem:[%s1503 + $0x70] sm:$0xff]
        %v1519 = vld [vmem:[%s1503 + $0x78] sm:$0xff]
        %v1520 = vld [vmem:[%s1503 + $0x80] sm:$0xff]
        %v1521 = vld [vmem:[%s1503 + $0x88] sm:$0xff]
        %v1522 = vld [vmem:[%s1503 + $0x90] sm:$0xff]
        %v1523 = vld [vmem:[%s1503 + $0x98] sm:$0xff]
        %v1524 = vld [vmem:[%s1503 + $0xa0] sm:$0xf]
        %v1525 = vld [vmem:[%s1503 + $0xa8] sm:$0xf]
        %v1526 = vrot.slane %v1163, 4
        %v1527 = vrot.slane %v1166, 4
        %v1528 = vsel %vm929, %v1526, %v1527
        %v1529 = vsel %vm1218, %v1528, 0
        %v1531 = vsel %vm1218, %v1527, 0
        %v1534 = vsel %vm929, %v1524, 0
        %v1537 = vsel %vm929, %v1525, 0
        %1539 = vmatpush.msra.mxu0 0.0
        %1540 = vmatpush.msra.mxu0 0.0
        %1541 = vmatpush.msra.mxu0 0.0
        %1542 = vmatpush.msra.mxu0 0.0
        %1543 = vmatpush.msra.mxu0 0.0
        %1544 = vmatpush.msra.mxu0 %v1534
        %1545 = vmatpush.msra.mxu0 %v1522
        %1546 = vmatpush.msra.mxu0 %v1520
        %1547 = vmatpush.msra.mxu0 %v1518
        %1548 = vmatpush.msra.mxu0 %v1516
        %1549 = vmatpush.msra.mxu0 %v1514
        %1550 = vmatpush.msra.mxu0 %v1512
        %1551 = vmatpush.msra.mxu0 %v1510
        %1552 = vmatpush.msra.mxu0 %v1508
        %1553 = vmatpush.msra.mxu0 %v1506
        %1554 = vmatpush.msra.mxu0 %v1504
        %1555 = vmatmul.f32.gmra.mxu0 %v1529
        %v1556 = vpop.f32.mrf.mxu0
        %v1557 = vadd.f32 0.0, %v1556
        %1558 = vmatmul.f32.gmra.mxu0 %v1531
        %v1559 = vpop.f32.mrf.mxu0
        %v1560 = vadd.f32 0.0, %v1559
        %1561 = vdwg.mxu0
        %1562 = vmatpush.msra.mxu0 0.0
        %1563 = vmatpush.msra.mxu0 0.0
        %1564 = vmatpush.msra.mxu0 0.0
        %1565 = vmatpush.msra.mxu0 0.0
        %1566 = vmatpush.msra.mxu0 0.0
        %1567 = vmatpush.msra.mxu0 %v1537
        %1568 = vmatpush.msra.mxu0 %v1523
        %1569 = vmatpush.msra.mxu0 %v1521
        %1570 = vmatpush.msra.mxu0 %v1519
        %1571 = vmatpush.msra.mxu0 %v1517
        %1572 = vmatpush.msra.mxu0 %v1515
        %1573 = vmatpush.msra.mxu0 %v1513
        %1574 = vmatpush.msra.mxu0 %v1511
        %1575 = vmatpush.msra.mxu0 %v1509
        %1576 = vmatpush.msra.mxu0 %v1507
        %1577 = vmatpush.msra.mxu0 %v1505
        %1578 = vmatmul.f32.gmra.mxu0 %v1529
        %v1579 = vpop.f32.mrf.mxu0
        %v1580 = vadd.f32 0.0, %v1579
        %1581 = vmatmul.f32.gmra.mxu0 %v1531
        %v1582 = vpop.f32.mrf.mxu0
        %v1583 = vadd.f32 0.0, %v1582
        %1584 = vdwg.mxu0
        %v1585 = vadd.f32 %v1499, %v1557
        %v1586 = vadd.f32 %v1500, %v1580
        %v1587 = vadd.f32 %v1501, %v1560
        %v1588 = vadd.f32 %v1502, %v1583
        %v1589 = vld [vmem:[%s6] sm:$0x3]
        %v1591 = vperm.slane %v1589, 0
        %v1592 = vperm.slane %v1589, 1
        %v1595 = vadd.f32 %v1585, %v1591
        %v1596 = vadd.f32 %v1586, %v1592
        %v1597 = vadd.f32 %v1587, %v1591
        %v1598 = vadd.f32 %v1588, %v1592
        %v1599 = vtanh.pop %v1595
        %v1600 = vtanh.pop %v1596
        %v1601 = vtanh.pop %v1597
        %v1602 = vtanh.pop %v1598
        %v1603 = vld [vmem:[%s7] sm:$0x1f]
        %vm1604 = vcmask 80896
        %v1606 = vsel %vm1604, %v1603, 0
        %vm1608 = vcmask 1041408
        %v1610 = vsel %vm1608, %v1601, 0
        %v1613 = vsel %vm1608, %v1602, 0
        %1615 = vmatpush.msra.mxu0 0.0
        %1616 = vmatpush.msra.mxu0 0.0
        %1617 = vmatpush.msra.mxu0 0.0
        %1618 = vmatpush.msra.mxu0 0.0
        %1619 = vmatpush.msra.mxu0 0.0
        %1620 = vmatpush.msra.mxu0 0.0
        %1621 = vmatpush.msra.mxu0 0.0
        %1622 = vmatpush.msra.mxu0 0.0
        %1623 = vmatpush.msra.mxu0 0.0
        %1624 = vmatpush.msra.mxu0 0.0
        %1625 = vmatpush.msra.mxu0 0.0
        %1626 = vmatpush.msra.mxu0 0.0
        %1627 = vmatpush.msra.mxu0 0.0
        %1628 = vmatpush.msra.mxu0 0.0
        %1629 = vmatpush.msra.mxu0 %v1610
        %1630 = vmatpush.msra.mxu0 %v1599
        %1631 = vmatmul.f32.gmra.mxu0 %v1606
        %v1632 = vpop.f32.mrf.mxu0
        %v1633 = vadd.f32 0.0, %v1632
        %1634 = vdwg.mxu0
        %1635 = vmatpush.msra.mxu0 0.0
        %1636 = vmatpush.msra.mxu0 0.0
        %1637 = vmatpush.msra.mxu0 0.0
        %1638 = vmatpush.msra.mxu0 0.0
        %1639 = vmatpush.msra.mxu0 0.0
        %1640 = vmatpush.msra.mxu0 0.0
        %1641 = vmatpush.msra.mxu0 0.0
        %1642 = vmatpush.msra.mxu0 0.0
        %1643 = vmatpush.msra.mxu0 0.0
        %1644 = vmatpush.msra.mxu0 0.0
        %1645 = vmatpush.msra.mxu0 0.0
        %1646 = vmatpush.msra.mxu0 0.0
        %1647 = vmatpush.msra.mxu0 0.0
        %1648 = vmatpush.msra.mxu0 0.0
        %1649 = vmatpush.msra.mxu0 %v1613
        %1650 = vmatpush.msra.mxu0 %v1600
        %1651 = vmatmul.f32.gmra.mxu0 %v1606
        %v1652 = vpop.f32.mrf.mxu0
        %v1653 = vadd.f32 0.0, %v1652
        %1654 = vdwg.mxu0
        %v1655 = vld [vmem:[%s8] sm:$0xff]
        %v1656 = vld [vmem:[%s8 + $0x8] sm:$0xff]
        %v1657 = vld [vmem:[%s8 + $0x10] sm:$0xff]
        %v1658 = vld [vmem:[%s8 + $0x18] sm:$0xff]
        %v1659 = vld [vmem:[%s8 + $0x20] sm:$0xff]
        %v1660 = vld [vmem:[%s8 + $0x28] sm:$0xff]
        %v1661 = vld [vmem:[%s8 + $0x30] sm:$0xff]
        %v1662 = vld [vmem:[%s8 + $0x38] sm:$0xff]
        %v1663 = vld [vmem:[%s8 + $0x40] sm:$0xff]
        %v1664 = vld [vmem:[%s8 + $0x48] sm:$0xff]
        %v1665 = vld [vmem:[%s8 + $0x50] sm:$0xff]
        %v1666 = vld [vmem:[%s8 + $0x58] sm:$0xff]
        %v1667 = vld [vmem:[%s8 + $0x60] sm:$0xff]
        %v1668 = vld [vmem:[%s8 + $0x68] sm:$0xff]
        %v1669 = vld [vmem:[%s8 + $0x70] sm:$0xff]
        %v1670 = vld [vmem:[%s8 + $0x78] sm:$0xff]
        %v1671 = vld [vmem:[%s8 + $0x80] sm:$0xff]
        %v1672 = vld [vmem:[%s8 + $0x88] sm:$0xff]
        %v1673 = vld [vmem:[%s8 + $0x90] sm:$0xff]
        %v1674 = vld [vmem:[%s8 + $0x98] sm:$0xff]
        %vm1675 = vcmask 261120
        %v1677 = vsel %vm1675, %v1653, 0
        %1679 = vmatpush.msra.mxu0 %v1670
        %1680 = vmatpush.msra.mxu0 %v1669
        %1681 = vmatpush.msra.mxu0 %v1668
        %1682 = vmatpush.msra.mxu0 %v1667
        %1683 = vmatpush.msra.mxu0 %v1666
        %1684 = vmatpush.msra.mxu0 %v1665
        %1685 = vmatpush.msra.mxu0 %v1664
        %1686 = vmatpush.msra.mxu0 %v1663
        %1687 = vmatpush.msra.mxu0 %v1662
        %1688 = vmatpush.msra.mxu0 %v1661
        %1689 = vmatpush.msra.mxu0 %v1660
        %1690 = vmatpush.msra.mxu0 %v1659
        %1691 = vmatpush.msra.mxu0 %v1658
        %1692 = vmatpush.msra.mxu0 %v1657
        %1693 = vmatpush.msra.mxu0 %v1656
        %1694 = vmatpush.msra.mxu0 %v1655
        %1695 = vmatmul.f32.gmra.mxu0 %v1633
        %v1696 = vpop.f32.mrf.mxu0
        %v1697 = vadd.f32 0.0, %v1696
        %1698 = vdwg.mxu0
        %1699 = vmatpush.msra.mxu0 0.0
        %1700 = vmatpush.msra.mxu0 0.0
        %1701 = vmatpush.msra.mxu0 0.0
        %1702 = vmatpush.msra.mxu0 0.0
        %1703 = vmatpush.msra.mxu0 0.0
        %1704 = vmatpush.msra.mxu0 0.0
        %1705 = vmatpush.msra.mxu0 0.0
        %1706 = vmatpush.msra.mxu0 0.0
        %1707 = vmatpush.msra.mxu0 0.0
        %1708 = vmatpush.msra.mxu0 0.0
        %1709 = vmatpush.msra.mxu0 0.0
        %1710 = vmatpush.msra.mxu0 0.0
        %1711 = vmatpush.msra.mxu0 %v1674
        %1712 = vmatpush.msra.mxu0 %v1673
        %1713 = vmatpush.msra.mxu0 %v1672
        %1714 = vmatpush.msra.mxu0 %v1671
        %1715 = vmatmul.f32.gmra.mxu0 %v1677
        %v1716 = vpop.f32.mrf.mxu0
        %v1717 = vadd.f32 %v1697, %v1716
        %1718 = vdwg.mxu0
        %v1719 = vld [vmem:[%s9] sm:$0xff]
        %v1720 = vld [vmem:[%s9 + $0x8] sm:$0xff]
        %v1721 = vld [vmem:[%s9 + $0x10] sm:$0xff]
        %v1722 = vld [vmem:[%s9 + $0x18] sm:$0xff]
        %v1723 = vld [vmem:[%s9 + $0x20] sm:$0xff]
        %v1724 = vld [vmem:[%s9 + $0x28] sm:$0xff]
        %v1725 = vld [vmem:[%s9 + $0x30] sm:$0xff]
        %v1726 = vld [vmem:[%s9 + $0x38] sm:$0xff]
        %v1727 = vld [vmem:[%s9 + $0x40] sm:$0xff]
        %v1728 = vld [vmem:[%s9 + $0x48] sm:$0xff]
        %s1729 = scalar_lea.vmem %s9, 80
        %v1730 = vld [vmem:[%s1729] sm:$0xff]
        %v1731 = vld [vmem:[%s1729 + $0x8] sm:$0xff]
        %v1732 = vld [vmem:[%s1729 + $0x10] sm:$0xff]
        %v1733 = vld [vmem:[%s1729 + $0x18] sm:$0xff]
        %v1734 = vld [vmem:[%s1729 + $0x20] sm:$0xff]
        %v1735 = vld [vmem:[%s1729 + $0x28] sm:$0xff]
        %v1736 = vld [vmem:[%s1729 + $0x30] sm:$0xff]
        %v1737 = vld [vmem:[%s1729 + $0x38] sm:$0xff]
        %v1738 = vld [vmem:[%s1729 + $0x40] sm:$0xff]
        %v1739 = vld [vmem:[%s1729 + $0x48] sm:$0xff]
        %v1741 = vrot.slane %v1717, 1
        %vm1742 = vcmask 654336
        %v1743 = vsel %vm1742, %v1741, 0
        %1745 = vmatpush.msra.mxu0 0.0
        %1746 = vmatpush.msra.mxu0 0.0
        %1747 = vmatpush.msra.mxu0 0.0
        %1748 = vmatpush.msra.mxu0 0.0
        %1749 = vmatpush.msra.mxu0 0.0
        %1750 = vmatpush.msra.mxu0 0.0
        %1751 = vmatpush.msra.mxu0 %v1739
        %1752 = vmatpush.msra.mxu0 %v1738
        %1753 = vmatpush.msra.mxu0 %v1737
        %1754 = vmatpush.msra.mxu0 %v1736
        %1755 = vmatpush.msra.mxu0 %v1735
        %1756 = vmatpush.msra.mxu0 %v1734
        %1757 = vmatpush.msra.mxu0 %v1733
        %1758 = vmatpush.msra.mxu0 %v1732
        %1759 = vmatpush.msra.mxu0 %v1731
        %1760 = vmatpush.msra.mxu0 %v1730
        %1761 = vmatmul.f32.gmra.mxu0 %v1743
        %v1762 = vpop.f32.mrf.mxu0
        %v1763 = vadd.f32 0.0, %v1762
        %1764 = vdwg.mxu0
        %v1765 = vsel %vm1742, %v1717, 0
        %1767 = vmatpush.msra.mxu0 0.0
        %1768 = vmatpush.msra.mxu0 0.0
        %1769 = vmatpush.msra.mxu0 0.0
        %1770 = vmatpush.msra.mxu0 0.0
        %1771 = vmatpush.msra.mxu0 0.0
        %1772 = vmatpush.msra.mxu0 0.0
        %1773 = vmatpush.msra.mxu0 %v1728
        %1774 = vmatpush.msra.mxu0 %v1727
        %1775 = vmatpush.msra.mxu0 %v1726
        %1776 = vmatpush.msra.mxu0 %v1725
        %1777 = vmatpush.msra.mxu0 %v1724
        %1778 = vmatpush.msra.mxu0 %v1723
        %1779 = vmatpush.msra.mxu0 %v1722
        %1780 = vmatpush.msra.mxu0 %v1721
        %1781 = vmatpush.msra.mxu0 %v1720
        %1782 = vmatpush.msra.mxu0 %v1719
        %1783 = vmatmul.f32.gmra.mxu0 %v1765
        %v1784 = vpop.f32.mrf.mxu0
        %v1785 = vadd.f32 %v1763, %v1784
        %1786 = vdwg.mxu0
        %s1787 = scalar_lea.vmem %s9, 160
        %v1788 = vld [vmem:[%s1787] sm:$0xff]
        %v1789 = vld [vmem:[%s1787 + $0x8] sm:$0xff]
        %v1790 = vld [vmem:[%s1787 + $0x10] sm:$0xff]
        %v1791 = vld [vmem:[%s1787 + $0x18] sm:$0xff]
        %v1792 = vld [vmem:[%s1787 + $0x20] sm:$0xff]
        %v1793 = vld [vmem:[%s1787 + $0x28] sm:$0xff]
        %v1794 = vld [vmem:[%s1787 + $0x30] sm:$0xff]
        %v1795 = vld [vmem:[%s1787 + $0x38] sm:$0xff]
        %v1796 = vld [vmem:[%s1787 + $0x40] sm:$0xff]
        %v1797 = vld [vmem:[%s1787 + $0x48] sm:$0xff]
        %v1798 = vrot.slane %v1717, 2
        %v1799 = vsel %vm1742, %v1798, 0
        %1801 = vmatpush.msra.mxu0 0.0
        %1802 = vmatpush.msra.mxu0 0.0
        %1803 = vmatpush.msra.mxu0 0.0
        %1804 = vmatpush.msra.mxu0 0.0
        %1805 = vmatpush.msra.mxu0 0.0
        %1806 = vmatpush.msra.mxu0 0.0
        %1807 = vmatpush.msra.mxu0 %v1797
        %1808 = vmatpush.msra.mxu0 %v1796
        %1809 = vmatpush.msra.mxu0 %v1795
        %1810 = vmatpush.msra.mxu0 %v1794
        %1811 = vmatpush.msra.mxu0 %v1793
        %1812 = vmatpush.msra.mxu0 %v1792
        %1813 = vmatpush.msra.mxu0 %v1791
        %1814 = vmatpush.msra.mxu0 %v1790
        %1815 = vmatpush.msra.mxu0 %v1789
        %1816 = vmatpush.msra.mxu0 %v1788
        %1817 = vmatmul.f32.gmra.mxu0 %v1799
        %v1818 = vpop.f32.mrf.mxu0
        %v1819 = vadd.f32 0.0, %v1818
        %1820 = vdwg.mxu0
        %v1821 = vadd.f32 %v1785, %v1819
        %s1822 = scalar_lea.vmem %s9, 240
        %v1823 = vld [vmem:[%s1822] sm:$0xff]
        %v1824 = vld [vmem:[%s1822 + $0x8] sm:$0xff]
        %v1825 = vld [vmem:[%s1822 + $0x10] sm:$0xff]
        %v1826 = vld [vmem:[%s1822 + $0x18] sm:$0xff]
        %v1827 = vld [vmem:[%s1822 + $0x20] sm:$0xff]
        %v1828 = vld [vmem:[%s1822 + $0x28] sm:$0xff]
        %v1829 = vld [vmem:[%s1822 + $0x30] sm:$0xff]
        %v1830 = vld [vmem:[%s1822 + $0x38] sm:$0xff]
        %v1831 = vld [vmem:[%s1822 + $0x40] sm:$0xff]
        %v1832 = vld [vmem:[%s1822 + $0x48] sm:$0xff]
        %v1833 = vrot.slane %v1717, 3
        %v1834 = vsel %vm1742, %v1833, 0
        %1836 = vmatpush.msra.mxu0 0.0
        %1837 = vmatpush.msra.mxu0 0.0
        %1838 = vmatpush.msra.mxu0 0.0
        %1839 = vmatpush.msra.mxu0 0.0
        %1840 = vmatpush.msra.mxu0 0.0
        %1841 = vmatpush.msra.mxu0 0.0
        %1842 = vmatpush.msra.mxu0 %v1832
        %1843 = vmatpush.msra.mxu0 %v1831
        %1844 = vmatpush.msra.mxu0 %v1830
        %1845 = vmatpush.msra.mxu0 %v1829
        %1846 = vmatpush.msra.mxu0 %v1828
        %1847 = vmatpush.msra.mxu0 %v1827
        %1848 = vmatpush.msra.mxu0 %v1826
        %1849 = vmatpush.msra.mxu0 %v1825
        %1850 = vmatpush.msra.mxu0 %v1824
        %1851 = vmatpush.msra.mxu0 %v1823
        %1852 = vmatmul.f32.gmra.mxu0 %v1834
        %v1853 = vpop.f32.mrf.mxu0
        %v1854 = vadd.f32 0.0, %v1853
        %1855 = vdwg.mxu0
        %v1856 = vadd.f32 %v1821, %v1854
        %s1857 = scalar_lea.vmem %s9, 320
        %v1858 = vld [vmem:[%s1857] sm:$0xff]
        %v1859 = vld [vmem:[%s1857 + $0x8] sm:$0xff]
        %v1860 = vld [vmem:[%s1857 + $0x10] sm:$0xff]
        %v1861 = vld [vmem:[%s1857 + $0x18] sm:$0xff]
        %v1862 = vld [vmem:[%s1857 + $0x20] sm:$0xff]
        %v1863 = vld [vmem:[%s1857 + $0x28] sm:$0xff]
        %v1864 = vld [vmem:[%s1857 + $0x30] sm:$0xff]
        %v1865 = vld [vmem:[%s1857 + $0x38] sm:$0xff]
        %v1866 = vld [vmem:[%s1857 + $0x40] sm:$0xff]
        %v1867 = vld [vmem:[%s1857 + $0x48] sm:$0xff]
        %v1868 = vrot.slane %v1717, 4
        %v1869 = vsel %vm1742, %v1868, 0
        %1871 = vmatpush.msra.mxu0 0.0
        %1872 = vmatpush.msra.mxu0 0.0
        %1873 = vmatpush.msra.mxu0 0.0
        %1874 = vmatpush.msra.mxu0 0.0
        %1875 = vmatpush.msra.mxu0 0.0
        %1876 = vmatpush.msra.mxu0 0.0
        %1877 = vmatpush.msra.mxu0 %v1867
        %1878 = vmatpush.msra.mxu0 %v1866
        %1879 = vmatpush.msra.mxu0 %v1865
        %1880 = vmatpush.msra.mxu0 %v1864
        %1881 = vmatpush.msra.mxu0 %v1863
        %1882 = vmatpush.msra.mxu0 %v1862
        %1883 = vmatpush.msra.mxu0 %v1861
        %1884 = vmatpush.msra.mxu0 %v1860
        %1885 = vmatpush.msra.mxu0 %v1859
        %1886 = vmatpush.msra.mxu0 %v1858
        %1887 = vmatmul.f32.gmra.mxu0 %v1869
        %v1888 = vpop.f32.mrf.mxu0
        %v1889 = vadd.f32 0.0, %v1888
        %1890 = vdwg.mxu0
        %v1891 = vadd.f32 %v1856, %v1889
        %v1892 = vld [vmem:[%s10] sm:$0x1]
        %v1893 = vadd.f32 %v1891, %v1892
        %v1894 = vtanh.pop %v1893
        %v1895 = vld [vmem:[%s11] sm:$0xff]
        %v1896 = vld [vmem:[%s11 + $0x8] sm:$0xff]
        %v1897 = vld [vmem:[%s11 + $0x10] sm:$0xff]
        %v1898 = vld [vmem:[%s11 + $0x18] sm:$0xff]
        %v1899 = vld [vmem:[%s11 + $0x20] sm:$0xff]
        %v1900 = vld [vmem:[%s11 + $0x28] sm:$0xff]
        %v1901 = vld [vmem:[%s11 + $0x30] sm:$0xff]
        %v1902 = vld [vmem:[%s11 + $0x38] sm:$0xff]
        %v1903 = vld [vmem:[%s11 + $0x40] sm:$0xff]
        %v1904 = vld [vmem:[%s11 + $0x48] sm:$0xff]
        %v1905 = vld [vmem:[%s11 + $0x50] sm:$0xff]
        %v1906 = vld [vmem:[%s11 + $0x58] sm:$0xff]
        %v1907 = vld [vmem:[%s11 + $0x60] sm:$0xff]
        %v1908 = vld [vmem:[%s11 + $0x68] sm:$0xff]
        %v1909 = vld [vmem:[%s11 + $0x70] sm:$0xff]
        %v1910 = vld [vmem:[%s12] sm:$0x1]
        %vm1911 = vcmask 982016
        %v1913 = vsel %vm1911, %v1894, 0
        %1915 = vmatpush.msra.mxu0 0.0
        %1916 = vmatpush.msra.mxu0 %v1909
        %1917 = vmatpush.msra.mxu0 %v1908
        %1918 = vmatpush.msra.mxu0 %v1907
        %1919 = vmatpush.msra.mxu0 %v1906
        %1920 = vmatpush.msra.mxu0 %v1905
        %1921 = vmatpush.msra.mxu0 %v1904
        %1922 = vmatpush.msra.mxu0 %v1903
        %1923 = vmatpush.msra.mxu0 %v1902
        %1924 = vmatpush.msra.mxu0 %v1901
        %1925 = vmatpush.msra.mxu0 %v1900
        %1926 = vmatpush.msra.mxu0 %v1899
        %1927 = vmatpush.msra.mxu0 %v1898
        %1928 = vmatpush.msra.mxu0 %v1897
        %1929 = vmatpush.msra.mxu0 %v1896
        %1930 = vmatpush.msra.mxu0 %v1895
        %1931 = vmatmul.f32.gmra.mxu0 %v1913
        %v1932 = vpop.f32.mrf.mxu0
        %v1933 = vadd.f32 %v1910, %v1932
        %1934 = vdwg.mxu0
        %v1935 = vtanh.pop %v1933
        %v1936 = vld [vmem:[%s13] sm:$0xff]
        %v1937 = vld [vmem:[%s13 + $0x8] sm:$0xff]
        %v1938 = vld [vmem:[%s13 + $0x10] sm:$0xff]
        %v1939 = vld [vmem:[%s13 + $0x18] sm:$0xff]
        %v1940 = vld [vmem:[%s13 + $0x20] sm:$0xff]
        %v1941 = vld [vmem:[%s13 + $0x28] sm:$0xff]
        %v1942 = vld [vmem:[%s13 + $0x30] sm:$0xff]
        %v1943 = vld [vmem:[%s13 + $0x38] sm:$0xff]
        %v1944 = vld [vmem:[%s13 + $0x40] sm:$0xff]
        %v1945 = vld [vmem:[%s13 + $0x48] sm:$0xff]
        %v1946 = vld [vmem:[%s13 + $0x50] sm:$0xf]
        %v1947 = vld [vmem:[%s14] sm:$0x1]
        %v1949 = vsel %vm1218, %v1935, 0
        %v1952 = vsel %vm929, %v1946, 0
        %1954 = vmatpush.msra.mxu0 0.0
        %1955 = vmatpush.msra.mxu0 0.0
        %1956 = vmatpush.msra.mxu0 0.0
        %1957 = vmatpush.msra.mxu0 0.0
        %1958 = vmatpush.msra.mxu0 0.0
        %1959 = vmatpush.msra.mxu0 %v1952
        %1960 = vmatpush.msra.mxu0 %v1945
        %1961 = vmatpush.msra.mxu0 %v1944
        %1962 = vmatpush.msra.mxu0 %v1943
        %1963 = vmatpush.msra.mxu0 %v1942
        %1964 = vmatpush.msra.mxu0 %v1941
        %1965 = vmatpush.msra.mxu0 %v1940
        %1966 = vmatpush.msra.mxu0 %v1939
        %1967 = vmatpush.msra.mxu0 %v1938
        %1968 = vmatpush.msra.mxu0 %v1937
        %1969 = vmatpush.msra.mxu0 %v1936
        %1970 = vmatmul.f32.gmra.mxu0 %v1949
        %v1971 = vpop.f32.mrf.mxu0
        %v1972 = vadd.f32 %v1947, %v1971
        %1973 = vdwg.mxu0
        %vm1974 = vcmask 73728
        %1975 = vst.msk [vmem:[%s486] sm:$0x1] %vm1974, %v1972
        %s1976 = sand.u32 %s357, 1
        %s1977 = scalar_lea.sflag [#allocation3], %s1976
        %s1978 = sand.u32 %s357, 1
        %s1979 = scalar_lea.vmem [#allocation2], %s1978
        // Predicated region
        $region81: #{lenet5_forward.1} parent=79 // pred_check
          %p1980 = pneg %p367
        $region82: #{lenet5_forward.1} parent=79 // pred_check_branch
          %1982 = sbr.rel (%p1980) target = $region84
        $region83: #{lenet5_forward.1} parent=79 // pred_region
          %1984 = vsyncadd %s1977, 0
          %s1985 = scalar_lea.hbm %s15, %s29
          %s1987 = sshll.u32 %s1979, 4
          %s1988 = int_to_ptr.vmem [resolvable:$true] %s1987
          %s1989 = sshll.u32 %s1985, 4
          %s1990 = int_to_ptr.hbm [resolvable:$true] %s1989
          %1992 = dma.vmem_to_hbm [thread:$0]  %s1988, 16, %s1990, %s1977
        $region84: #{lenet5_forward.1} parent=79 // pred_fallthru
          _
      $region80: #{lenet5_forward.1} parent=5 // pred_fallthru
        _
      %p1993 = scmp.le.s32.totalorder 2, %s24
      // Predicated region
      $region85: #{lenet5_forward.1} parent=5 // pred_check
        %p1994 = pneg %p1993
      $region86: #{lenet5_forward.1} parent=5 // pred_check_branch
        %1996 = sbr.rel (%p1994) target = $region88
      $region87: #{lenet5_forward.1} parent=5 // pred_region
        %s1997 = ssub.s32 %s24, 2
        // Predicated region
        $region89: #{lenet5_forward.1} parent=87 // pred_check
          %p1998 = pneg %p373
        $region90: #{lenet5_forward.1} parent=87 // pred_check_branch
          %2000 = sbr.rel (%p1998) target = $region92
        $region91: #{lenet5_forward.1} parent=87 // pred_region
          %s2001 = sand.u32 %s358, 1
          %s2002 = scalar_lea.sflag [#allocation3], %s2001
          %s2003 = sand.u32 %s358, 1
          %s2004 = scalar_lea.vmem [#allocation2], %s2003
          %2006 = dma.done %s2002, 16
        $region92: #{lenet5_forward.1} parent=87 // pred_fallthru
          _
      $region88: #{lenet5_forward.1} parent=5 // pred_fallthru
        _
    $region6: #{lenet5_forward.1} parent=1 // loop_footer
      %s28 = sadd.s32 1, %s24
    $region7: #{lenet5_forward.1} parent=1 // loop_footer_branch
      %23 = sbr.rel target = $region3
    $region8: #{lenet5_forward.1} parent=1 // loop_exit
      _
    %2007 = vsyncpa [#allocation3], 1
    %s2008 = scalar_lea.sflag [#allocation3], 1
    %2009 = vsyncpa %s2008, 1

</llo_original>
